<compile_context>
chip_gen: v5e
topology: v5e:2x2
jax: 0.10.0
libtpu: 0.0.40
codegen_flags: <defaults>
</compile_context>

<pallas_src>
import numpy as np

import jax
import jax.numpy as jnp
from jax.experimental import pallas as pl
from jax.experimental.pallas import tpu as pltpu


_PARAM_ORDER = ("w1", "b1", "w2", "b2", "f1w", "f1b", "f2w", "f2b", "f3w", "f3b")


# ------------------------------ fused kernel -------------------------------

def _lenet_kernel(x_ref, w1_ref, b1_ref, w2_ref, b2_ref,
                  f1w_ref, f1b_ref, f2w_ref, f2b_ref, f3w_ref, f3b_ref,
                  o_ref, p1e_ref, p1o_ref, p2_ref):
    """Full LeNet forward for one image (grid axis = batch)."""
    bf16, f32 = jnp.bfloat16, jnp.float32

    def band_matmul(rows_fn, w_ref, n_rows, n_cols):
        # Convolution as a sum over the 5 kernel rows of banded GEMMs.
        acc = jnp.zeros((n_rows, n_cols), f32)
        for kh in range(5):
            acc += jnp.dot(rows_fn(kh).astype(bf16), w_ref[kh],
                           preferred_element_type=f32)
        return acc

    def wpool_bias_relu(a, half, b_ref):
        # W-direction 2x2 pool (columns are pre-permuted so it is a max of
        # the two lane halves), then bias + ReLU.
        a = jnp.maximum(a[:, :half], a[:, half:])
        return jnp.maximum(a + b_ref[...], 0.0)

    # ---- conv1 (1->6, 5x5, pad pre-applied) + ReLU + 2x2 maxpool ----------
    # x_ref[c, t, :] == padded_image[4*t + c, :].  Conv output row 4*t + c2
    # lives in y[c2][t], so the H-direction pool pairs (y[0], y[1]) and
    # (y[2], y[3]) elementwise.
    def x_rows(c2):
        def rows(kh):
            s = c2 + kh
            return x_ref[s % 4, pl.ds(s // 4, 7), :]
        return rows

    y = [band_matmul(x_rows(c2), w1_ref, 7, 168) for c2 in range(4)]
    p1e_ref[...] = wpool_bias_relu(jnp.maximum(y[0], y[1]), 84, b1_ref)
    p1o_ref[...] = wpool_bias_relu(jnp.maximum(y[2], y[3]), 84, b1_ref)

    # ---- conv2 (6->16, 5x5, no pad) + ReLU + 2x2 maxpool ------------------
    # p1e_ref[t] / p1o_ref[t] hold pooled rows 2t / 2t+1 of the 14x14x6 map,
    # so even/odd conv2 output rows again come from contiguous row slices.
    def c2_rows_even(kh):
        ref = p1e_ref if kh % 2 == 0 else p1o_ref
        return ref[pl.ds(kh // 2, 5), :]

    def c2_rows_odd(kh):
        if kh % 2 == 0:
            return p1o_ref[pl.ds(kh // 2, 5), :]
        return p1e_ref[pl.ds(kh // 2 + 1, 5), :]

    y2e = band_matmul(c2_rows_even, w2_ref, 5, 160)
    y2o = band_matmul(c2_rows_odd, w2_ref, 5, 160)
    p2_ref[...] = wpool_bias_relu(jnp.maximum(y2e, y2o), 80, b2_ref)

    # ---- FC head 400 -> 120 -> 84 -> 10 (View(400) absorbed into f1w) -----
    h = jnp.zeros((1, 120), f32)
    for hh in range(5):
        h += jnp.dot(p2_ref[pl.ds(hh, 1), :].astype(bf16), f1w_ref[hh],
                     preferred_element_type=f32)
    h = jnp.maximum(h + f1b_ref[...], 0.0)
    h = jnp.dot(h.astype(bf16), f2w_ref[...], preferred_element_type=f32)
    h = jnp.maximum(h + f2b_ref[...], 0.0)
    h = jnp.dot(h.astype(bf16), f3w_ref[...], preferred_element_type=f32)
    o_ref[...] = h + f3b_ref[...]


# ------------------------------ forward wrapper -----------------------------

def lenet_forward(params, x):
    """x: [B, 1, 28, 28] float32 -> logits [B, 10] float32."""
    assert x.shape[1:] == (1, 28, 28), "LeNet expects 1x28x28 inputs"
    B = x.shape[0]
    # Only wrapper-side activation ops: constant zero pad + tiny row
    # regrouping so the fused maxpool never needs strided access:
    #   xg[b, c, t, :] = x_padded[b, 4*t + c, :]
    xp = jnp.pad(x[:, 0], ((0, 0), (2, 2), (2, 2)))          # [B, 32, 32]
    xg = xp.reshape(B, 8, 4, 32).transpose(0, 2, 1, 3)       # [B, 4, 8, 32]

    weights = [params[k] for k in _PARAM_ORDER]
    in_specs = [pl.BlockSpec((None, 4, 8, 32), lambda b: (b, 0, 0, 0))]
    for w in weights:
        in_specs.append(pl.BlockSpec(w.shape, lambda b, nd=w.ndim: (0,) * nd))

    out = pl.pallas_call(
        _lenet_kernel,
        out_shape=jax.ShapeDtypeStruct((B, 1, 10), jnp.float32),
        grid=(B,),
        in_specs=in_specs,
        out_specs=pl.BlockSpec((None, 1, 10), lambda b: (b, 0, 0)),
        scratch_shapes=[pltpu.VMEM((7, 84), jnp.float32),   # pooled1, even rows
                        pltpu.VMEM((7, 84), jnp.float32),   # pooled1, odd rows
                        pltpu.VMEM((5, 80), jnp.float32)],  # pooled2
        compiler_params=pltpu.CompilerParams(
            dimension_semantics=("parallel",)),
    )(xg, *weights)
    return out.reshape(B, 10)


# ------------------------------ parameters ---------------------------------

def init_params(key):
    """Deterministic PyTorch-style uniform init for the LeNet shapes."""
    keys = jax.random.split(key, 10)

    def u(k, shape, fan_in):
        bound = 1.0 / np.sqrt(float(fan_in))
        return jax.random.uniform(k, shape, jnp.float32, -bound, bound)

    return {
        "conv1_w": u(keys[0], (6, 1, 5, 5), 25),
        "conv1_b": u(keys[1], (6,), 25),
        "conv2_w": u(keys[2], (16, 6, 5, 5), 150),
        "conv2_b": u(keys[3], (16,), 150),
        "fc1_w": u(keys[4], (120, 400), 400),
        "fc1_b": u(keys[5], (120,), 400),
        "fc2_w": u(keys[6], (84, 120), 120),
        "fc2_b": u(keys[7], (84,), 120),
        "fc3_w": u(keys[8], (10, 84), 84),
        "fc3_b": u(keys[9], (10,), 84),
    }


def _banded_conv(w, b, in_w, out_w):
    """Banded GEMM matrices for a stride-1 VALID conv on an activation laid
    out as [H, Cin*in_w] (column = cin*in_w + x).

    Returns (mats [KH, Cin*in_w, Cout*out_w], pooled bias [1, Cout*out_w//2]).
    Output columns are permuted so a following 2x2 maxpool over W is simply
    max(left lane half, right lane half):
        col(co, ow) = co*(out_w//2) + ow//2   (+ Cout*out_w//2 if ow is odd)
    """
    w = np.asarray(w, np.float32)
    b = np.asarray(b, np.float32)
    cout, cin, kh_sz, kw_sz = w.shape
    owh = out_w // 2
    half = cout * owh
    mats = np.zeros((kh_sz, cin * in_w, cout * out_w), np.float32)
    for kh in range(kh_sz):
        for co in range(cout):
            for ow in range(out_w):
                col = co * owh + ow // 2 + (half if ow % 2 else 0)
                for ci in range(cin):
                    for kw in range(kw_sz):
                        mats[kh, ci * in_w + ow + kw, col] = w[co, ci, kh, kw]
    pooled_bias = np.repeat(b, owh)[None, :]
    return mats, pooled_bias


def prepare_params(raw):
    """One-time host-side weight prep (hoisted out of the jitted forward)."""
    bf16, f32 = jnp.bfloat16, jnp.float32
    w1, b1 = _banded_conv(raw["conv1_w"], raw["conv1_b"], in_w=32, out_w=28)
    w2, b2 = _banded_conv(raw["conv2_w"], raw["conv2_b"], in_w=14, out_w=10)
    # fc1 rearranged so the NCHW View(400) (index c*25 + h*5 + w) becomes a
    # sum over h of [1, 80] @ [80, 120] against pooled2's [h, c*5 + w] layout.
    f1 = np.asarray(raw["fc1_w"], np.float32).reshape(120, 16, 5, 5)
    f1 = f1.transpose(2, 1, 3, 0).reshape(5, 80, 120)
    return {
        "w1": jnp.asarray(w1, bf16), "b1": jnp.asarray(b1, f32),
        "w2": jnp.asarray(w2, bf16), "b2": jnp.asarray(b2, f32),
        "f1w": jnp.asarray(f1, bf16),
        "f1b": jnp.asarray(np.asarray(raw["fc1_b"], np.float32)[None, :]),
        "f2w": jnp.asarray(np.asarray(raw["fc2_w"], np.float32).T, bf16),
        "f2b": jnp.asarray(np.asarray(raw["fc2_b"], np.float32)[None, :]),
        "f3w": jnp.asarray(np.asarray(raw["fc3_w"], np.float32).T, bf16),
        "f3b": jnp.asarray(np.asarray(raw["fc3_b"], np.float32)[None, :]),
    }


# ------------------------------ reference (XLA) -----------------------------

def _reference_forward(raw, x):
    """Pure-XLA reference with the same bf16-in / f32-accumulate quantization."""
    bf16, f32 = jnp.bfloat16, jnp.float32

    def conv(h, w, b, pad):
        y = jax.lax.conv_general_dilated(
            h.astype(bf16), w.astype(bf16), window_strides=(1, 1),
            padding=((pad, pad), (pad, pad)),
            dimension_numbers=("NCHW", "OIHW", "NCHW"),
            preferred_element_type=f32)
        return jnp.maximum(y + b.reshape(1, -1, 1, 1), 0.0)

    def pool(h):
        return jax.lax.reduce_window(h, -jnp.inf, jax.lax.max,
                                     (1, 1, 2, 2), (1, 1, 2, 2), "VALID")

    h = pool(conv(x, raw["conv1_w"], raw["conv1_b"], 2))
    h = pool(conv(h, raw["conv2_w"], raw["conv2_b"], 0))
    h = h.reshape(h.shape[0], 400)
    h = jnp.maximum(jnp.dot(h.astype(bf16), raw["fc1_w"].T.astype(bf16),
                            preferred_element_type=f32) + raw["fc1_b"], 0.0)
    h = jnp.maximum(jnp.dot(h.astype(bf16), raw["fc2_w"].T.astype(bf16),
                            preferred_element_type=f32) + raw["fc2_b"], 0.0)
    return jnp.dot(h.astype(bf16), raw["fc3_w"].T.astype(bf16),
                   preferred_element_type=f32) + raw["fc3_b"]


# ------------------------------ main ----------------------------------------

if __name__ == "__main__":
    key = jax.random.PRNGKey(0)
    pkey, xkey = jax.random.split(key)
    raw = init_params(pkey)
    params = prepare_params(raw)          # executed once, outside jit
    x = jax.random.normal(xkey, (2, 1, 28, 28), jnp.float32)

    fwd = jax.jit(lenet_forward)
    out = jax.block_until_ready(fwd(params, x))
    assert out.shape == (2, 10) and out.dtype == jnp.float32

    ref = jax.block_until_ready(_reference_forward(raw, x))
    assert jnp.allclose(out, ref, atol=1e-2, rtol=1e-2), (out, ref)
    print("KERNEL_OK")
</pallas_src>

<mosaic_0001>
module attributes {stable_mosaic.version = 11 : i64} {
  func.func @_lenet_kernel(%arg0: i32, %arg1: memref<1x4x8x32xf32, #tpu.memory_space<vmem>>, %arg2: memref<5x32x168xbf16, #tpu.memory_space<vmem>>, %arg3: memref<1x84xf32, #tpu.memory_space<vmem>>, %arg4: memref<5x84x160xbf16, #tpu.memory_space<vmem>>, %arg5: memref<1x80xf32, #tpu.memory_space<vmem>>, %arg6: memref<5x80x120xbf16, #tpu.memory_space<vmem>>, %arg7: memref<1x120xf32, #tpu.memory_space<vmem>>, %arg8: memref<120x84xbf16, #tpu.memory_space<vmem>>, %arg9: memref<1x84xf32, #tpu.memory_space<vmem>>, %arg10: memref<84x10xbf16, #tpu.memory_space<vmem>>, %arg11: memref<1x10xf32, #tpu.memory_space<vmem>>, %arg12: memref<1x1x10xf32, #tpu.memory_space<vmem>>, %arg13: memref<7x84xf32, #tpu.memory_space<vmem>>, %arg14: memref<7x84xf32, #tpu.memory_space<vmem>>, %arg15: memref<5x80xf32, #tpu.memory_space<vmem>>) attributes {dimension_semantics = [#tpu.dimension_semantics<parallel>], iteration_bounds = array<i64: 2>, scalar_prefetch = 0 : i64, scratch_operands = 3 : i64, tpu.core_type = #tpu.core_type<tc>, window_params = [{transform_indices = @transform_0, window_bounds = array<i64: 1, 4, 8, 32>}, {pipeline_mode = #tpu.pipeline_mode<synchronous>, transform_indices = @transform_1, window_bounds = array<i64: 5, 32, 168>}, {pipeline_mode = #tpu.pipeline_mode<synchronous>, transform_indices = @transform_2, window_bounds = array<i64: 1, 84>}, {pipeline_mode = #tpu.pipeline_mode<synchronous>, transform_indices = @transform_3, window_bounds = array<i64: 5, 84, 160>}, {pipeline_mode = #tpu.pipeline_mode<synchronous>, transform_indices = @transform_4, window_bounds = array<i64: 1, 80>}, {pipeline_mode = #tpu.pipeline_mode<synchronous>, transform_indices = @transform_5, window_bounds = array<i64: 5, 80, 120>}, {pipeline_mode = #tpu.pipeline_mode<synchronous>, transform_indices = @transform_6, window_bounds = array<i64: 1, 120>}, {pipeline_mode = #tpu.pipeline_mode<synchronous>, transform_indices = @transform_7, window_bounds = array<i64: 120, 84>}, {pipeline_mode = #tpu.pipeline_mode<synchronous>, transform_indices = @transform_8, window_bounds = array<i64: 1, 84>}, {pipeline_mode = #tpu.pipeline_mode<synchronous>, transform_indices = @transform_9, window_bounds = array<i64: 84, 10>}, {pipeline_mode = #tpu.pipeline_mode<synchronous>, transform_indices = @transform_10, window_bounds = array<i64: 1, 10>}, {transform_indices = @transform_11, window_bounds = array<i64: 1, 1, 10>}]} {
    %cst = arith.constant 0.000000e+00 : f32
    %0 = vector.broadcast %cst : f32 to vector<7x168xf32>
    %c0 = arith.constant 0 : index
    %c0_0 = arith.constant 0 : index
    %c0_1 = arith.constant 0 : index
    %c0_2 = arith.constant 0 : index
    %1 = vector.load %arg1[%c0, %c0_0, %c0_1, %c0_2] : memref<1x4x8x32xf32, #tpu.memory_space<vmem>>, vector<1x1x7x32xf32>
    %2 = vector.shape_cast %1 : vector<1x1x7x32xf32> to vector<7x32xf32>
    %3 = arith.truncf %2 : vector<7x32xf32> to vector<7x32xbf16>
    %c0_3 = arith.constant 0 : index
    %c0_4 = arith.constant 0 : index
    %c0_5 = arith.constant 0 : index
    %4 = vector.load %arg2[%c0_3, %c0_4, %c0_5] : memref<5x32x168xbf16, #tpu.memory_space<vmem>>, vector<1x32x168xbf16>
    %5 = vector.shape_cast %4 : vector<1x32x168xbf16> to vector<32x168xbf16>
    %cst_6 = arith.constant dense<0.000000e+00> : vector<7x168xf32>
    %6 = tpu.matmul %3, %5, %cst_6 {dimension_numbers = #tpu.dot_dimension_numbers<[1], [0], [0], [1], [0, 0, 1, 1], [], []>} : vector<7x32xbf16>, vector<32x168xbf16>, vector<7x168xf32> -> vector<7x168xf32>
    %7 = arith.addf %0, %6 : vector<7x168xf32>
    %c0_7 = arith.constant 0 : index
    %c1 = arith.constant 1 : index
    %c0_8 = arith.constant 0 : index
    %c0_9 = arith.constant 0 : index
    %8 = vector.load %arg1[%c0_7, %c1, %c0_8, %c0_9] : memref<1x4x8x32xf32, #tpu.memory_space<vmem>>, vector<1x1x7x32xf32>
    %9 = vector.shape_cast %8 : vector<1x1x7x32xf32> to vector<7x32xf32>
    %10 = arith.truncf %9 : vector<7x32xf32> to vector<7x32xbf16>
    %c1_10 = arith.constant 1 : index
    %c0_11 = arith.constant 0 : index
    %c0_12 = arith.constant 0 : index
    %11 = vector.load %arg2[%c1_10, %c0_11, %c0_12] : memref<5x32x168xbf16, #tpu.memory_space<vmem>>, vector<1x32x168xbf16>
    %12 = vector.shape_cast %11 : vector<1x32x168xbf16> to vector<32x168xbf16>
    %cst_13 = arith.constant dense<0.000000e+00> : vector<7x168xf32>
    %13 = tpu.matmul %10, %12, %cst_13 {dimension_numbers = #tpu.dot_dimension_numbers<[1], [0], [0], [1], [0, 0, 1, 1], [], []>} : vector<7x32xbf16>, vector<32x168xbf16>, vector<7x168xf32> -> vector<7x168xf32>
    %14 = arith.addf %7, %13 : vector<7x168xf32>
    %c0_14 = arith.constant 0 : index
    %c2 = arith.constant 2 : index
    %c0_15 = arith.constant 0 : index
    %c0_16 = arith.constant 0 : index
    %15 = vector.load %arg1[%c0_14, %c2, %c0_15, %c0_16] : memref<1x4x8x32xf32, #tpu.memory_space<vmem>>, vector<1x1x7x32xf32>
    %16 = vector.shape_cast %15 : vector<1x1x7x32xf32> to vector<7x32xf32>
    %17 = arith.truncf %16 : vector<7x32xf32> to vector<7x32xbf16>
    %c2_17 = arith.constant 2 : index
    %c0_18 = arith.constant 0 : index
    %c0_19 = arith.constant 0 : index
    %18 = vector.load %arg2[%c2_17, %c0_18, %c0_19] : memref<5x32x168xbf16, #tpu.memory_space<vmem>>, vector<1x32x168xbf16>
    %19 = vector.shape_cast %18 : vector<1x32x168xbf16> to vector<32x168xbf16>
    %cst_20 = arith.constant dense<0.000000e+00> : vector<7x168xf32>
    %20 = tpu.matmul %17, %19, %cst_20 {dimension_numbers = #tpu.dot_dimension_numbers<[1], [0], [0], [1], [0, 0, 1, 1], [], []>} : vector<7x32xbf16>, vector<32x168xbf16>, vector<7x168xf32> -> vector<7x168xf32>
    %21 = arith.addf %14, %20 : vector<7x168xf32>
    %c0_21 = arith.constant 0 : index
    %c3 = arith.constant 3 : index
    %c0_22 = arith.constant 0 : index
    %c0_23 = arith.constant 0 : index
    %22 = vector.load %arg1[%c0_21, %c3, %c0_22, %c0_23] : memref<1x4x8x32xf32, #tpu.memory_space<vmem>>, vector<1x1x7x32xf32>
    %23 = vector.shape_cast %22 : vector<1x1x7x32xf32> to vector<7x32xf32>
    %24 = arith.truncf %23 : vector<7x32xf32> to vector<7x32xbf16>
    %c3_24 = arith.constant 3 : index
    %c0_25 = arith.constant 0 : index
    %c0_26 = arith.constant 0 : index
    %25 = vector.load %arg2[%c3_24, %c0_25, %c0_26] : memref<5x32x168xbf16, #tpu.memory_space<vmem>>, vector<1x32x168xbf16>
    %26 = vector.shape_cast %25 : vector<1x32x168xbf16> to vector<32x168xbf16>
    %cst_27 = arith.constant dense<0.000000e+00> : vector<7x168xf32>
    %27 = tpu.matmul %24, %26, %cst_27 {dimension_numbers = #tpu.dot_dimension_numbers<[1], [0], [0], [1], [0, 0, 1, 1], [], []>} : vector<7x32xbf16>, vector<32x168xbf16>, vector<7x168xf32> -> vector<7x168xf32>
    %28 = arith.addf %21, %27 : vector<7x168xf32>
    %c0_28 = arith.constant 0 : index
    %c0_29 = arith.constant 0 : index
    %c1_30 = arith.constant 1 : index
    %c0_31 = arith.constant 0 : index
    %29 = vector.load %arg1[%c0_28, %c0_29, %c1_30, %c0_31] : memref<1x4x8x32xf32, #tpu.memory_space<vmem>>, vector<1x1x7x32xf32>
    %30 = vector.shape_cast %29 : vector<1x1x7x32xf32> to vector<7x32xf32>
    %31 = arith.truncf %30 : vector<7x32xf32> to vector<7x32xbf16>
    %c4 = arith.constant 4 : index
    %c0_32 = arith.constant 0 : index
    %c0_33 = arith.constant 0 : index
    %32 = vector.load %arg2[%c4, %c0_32, %c0_33] : memref<5x32x168xbf16, #tpu.memory_space<vmem>>, vector<1x32x168xbf16>
    %33 = vector.shape_cast %32 : vector<1x32x168xbf16> to vector<32x168xbf16>
    %cst_34 = arith.constant dense<0.000000e+00> : vector<7x168xf32>
    %34 = tpu.matmul %31, %33, %cst_34 {dimension_numbers = #tpu.dot_dimension_numbers<[1], [0], [0], [1], [0, 0, 1, 1], [], []>} : vector<7x32xbf16>, vector<32x168xbf16>, vector<7x168xf32> -> vector<7x168xf32>
    %35 = arith.addf %28, %34 : vector<7x168xf32>
    %cst_35 = arith.constant 0.000000e+00 : f32
    %36 = vector.broadcast %cst_35 : f32 to vector<7x168xf32>
    %c0_36 = arith.constant 0 : index
    %c1_37 = arith.constant 1 : index
    %c0_38 = arith.constant 0 : index
    %c0_39 = arith.constant 0 : index
    %37 = vector.load %arg1[%c0_36, %c1_37, %c0_38, %c0_39] : memref<1x4x8x32xf32, #tpu.memory_space<vmem>>, vector<1x1x7x32xf32>
    %38 = vector.shape_cast %37 : vector<1x1x7x32xf32> to vector<7x32xf32>
    %39 = arith.truncf %38 : vector<7x32xf32> to vector<7x32xbf16>
    %c0_40 = arith.constant 0 : index
    %c0_41 = arith.constant 0 : index
    %c0_42 = arith.constant 0 : index
    %40 = vector.load %arg2[%c0_40, %c0_41, %c0_42] : memref<5x32x168xbf16, #tpu.memory_space<vmem>>, vector<1x32x168xbf16>
    %41 = vector.shape_cast %40 : vector<1x32x168xbf16> to vector<32x168xbf16>
    %cst_43 = arith.constant dense<0.000000e+00> : vector<7x168xf32>
    %42 = tpu.matmul %39, %41, %cst_43 {dimension_numbers = #tpu.dot_dimension_numbers<[1], [0], [0], [1], [0, 0, 1, 1], [], []>} : vector<7x32xbf16>, vector<32x168xbf16>, vector<7x168xf32> -> vector<7x168xf32>
    %43 = arith.addf %36, %42 : vector<7x168xf32>
    %c0_44 = arith.constant 0 : index
    %c2_45 = arith.constant 2 : index
    %c0_46 = arith.constant 0 : index
    %c0_47 = arith.constant 0 : index
    %44 = vector.load %arg1[%c0_44, %c2_45, %c0_46, %c0_47] : memref<1x4x8x32xf32, #tpu.memory_space<vmem>>, vector<1x1x7x32xf32>
    %45 = vector.shape_cast %44 : vector<1x1x7x32xf32> to vector<7x32xf32>
    %46 = arith.truncf %45 : vector<7x32xf32> to vector<7x32xbf16>
    %c1_48 = arith.constant 1 : index
    %c0_49 = arith.constant 0 : index
    %c0_50 = arith.constant 0 : index
    %47 = vector.load %arg2[%c1_48, %c0_49, %c0_50] : memref<5x32x168xbf16, #tpu.memory_space<vmem>>, vector<1x32x168xbf16>
    %48 = vector.shape_cast %47 : vector<1x32x168xbf16> to vector<32x168xbf16>
    %cst_51 = arith.constant dense<0.000000e+00> : vector<7x168xf32>
    %49 = tpu.matmul %46, %48, %cst_51 {dimension_numbers = #tpu.dot_dimension_numbers<[1], [0], [0], [1], [0, 0, 1, 1], [], []>} : vector<7x32xbf16>, vector<32x168xbf16>, vector<7x168xf32> -> vector<7x168xf32>
    %50 = arith.addf %43, %49 : vector<7x168xf32>
    %c0_52 = arith.constant 0 : index
    %c3_53 = arith.constant 3 : index
    %c0_54 = arith.constant 0 : index
    %c0_55 = arith.constant 0 : index
    %51 = vector.load %arg1[%c0_52, %c3_53, %c0_54, %c0_55] : memref<1x4x8x32xf32, #tpu.memory_space<vmem>>, vector<1x1x7x32xf32>
    %52 = vector.shape_cast %51 : vector<1x1x7x32xf32> to vector<7x32xf32>
    %53 = arith.truncf %52 : vector<7x32xf32> to vector<7x32xbf16>
    %c2_56 = arith.constant 2 : index
    %c0_57 = arith.constant 0 : index
    %c0_58 = arith.constant 0 : index
    %54 = vector.load %arg2[%c2_56, %c0_57, %c0_58] : memref<5x32x168xbf16, #tpu.memory_space<vmem>>, vector<1x32x168xbf16>
    %55 = vector.shape_cast %54 : vector<1x32x168xbf16> to vector<32x168xbf16>
    %cst_59 = arith.constant dense<0.000000e+00> : vector<7x168xf32>
    %56 = tpu.matmul %53, %55, %cst_59 {dimension_numbers = #tpu.dot_dimension_numbers<[1], [0], [0], [1], [0, 0, 1, 1], [], []>} : vector<7x32xbf16>, vector<32x168xbf16>, vector<7x168xf32> -> vector<7x168xf32>
    %57 = arith.addf %50, %56 : vector<7x168xf32>
    %c0_60 = arith.constant 0 : index
    %c0_61 = arith.constant 0 : index
    %c1_62 = arith.constant 1 : index
    %c0_63 = arith.constant 0 : index
    %58 = vector.load %arg1[%c0_60, %c0_61, %c1_62, %c0_63] : memref<1x4x8x32xf32, #tpu.memory_space<vmem>>, vector<1x1x7x32xf32>
    %59 = vector.shape_cast %58 : vector<1x1x7x32xf32> to vector<7x32xf32>
    %60 = arith.truncf %59 : vector<7x32xf32> to vector<7x32xbf16>
    %c3_64 = arith.constant 3 : index
    %c0_65 = arith.constant 0 : index
    %c0_66 = arith.constant 0 : index
    %61 = vector.load %arg2[%c3_64, %c0_65, %c0_66] : memref<5x32x168xbf16, #tpu.memory_space<vmem>>, vector<1x32x168xbf16>
    %62 = vector.shape_cast %61 : vector<1x32x168xbf16> to vector<32x168xbf16>
    %cst_67 = arith.constant dense<0.000000e+00> : vector<7x168xf32>
    %63 = tpu.matmul %60, %62, %cst_67 {dimension_numbers = #tpu.dot_dimension_numbers<[1], [0], [0], [1], [0, 0, 1, 1], [], []>} : vector<7x32xbf16>, vector<32x168xbf16>, vector<7x168xf32> -> vector<7x168xf32>
    %64 = arith.addf %57, %63 : vector<7x168xf32>
    %c0_68 = arith.constant 0 : index
    %c1_69 = arith.constant 1 : index
    %c1_70 = arith.constant 1 : index
    %c0_71 = arith.constant 0 : index
    %65 = vector.load %arg1[%c0_68, %c1_69, %c1_70, %c0_71] : memref<1x4x8x32xf32, #tpu.memory_space<vmem>>, vector<1x1x7x32xf32>
    %66 = vector.shape_cast %65 : vector<1x1x7x32xf32> to vector<7x32xf32>
    %67 = arith.truncf %66 : vector<7x32xf32> to vector<7x32xbf16>
    %c4_72 = arith.constant 4 : index
    %c0_73 = arith.constant 0 : index
    %c0_74 = arith.constant 0 : index
    %68 = vector.load %arg2[%c4_72, %c0_73, %c0_74] : memref<5x32x168xbf16, #tpu.memory_space<vmem>>, vector<1x32x168xbf16>
    %69 = vector.shape_cast %68 : vector<1x32x168xbf16> to vector<32x168xbf16>
    %cst_75 = arith.constant dense<0.000000e+00> : vector<7x168xf32>
    %70 = tpu.matmul %67, %69, %cst_75 {dimension_numbers = #tpu.dot_dimension_numbers<[1], [0], [0], [1], [0, 0, 1, 1], [], []>} : vector<7x32xbf16>, vector<32x168xbf16>, vector<7x168xf32> -> vector<7x168xf32>
    %71 = arith.addf %64, %70 : vector<7x168xf32>
    %cst_76 = arith.constant 0.000000e+00 : f32
    %72 = vector.broadcast %cst_76 : f32 to vector<7x168xf32>
    %c0_77 = arith.constant 0 : index
    %c2_78 = arith.constant 2 : index
    %c0_79 = arith.constant 0 : index
    %c0_80 = arith.constant 0 : index
    %73 = vector.load %arg1[%c0_77, %c2_78, %c0_79, %c0_80] : memref<1x4x8x32xf32, #tpu.memory_space<vmem>>, vector<1x1x7x32xf32>
    %74 = vector.shape_cast %73 : vector<1x1x7x32xf32> to vector<7x32xf32>
    %75 = arith.truncf %74 : vector<7x32xf32> to vector<7x32xbf16>
    %c0_81 = arith.constant 0 : index
    %c0_82 = arith.constant 0 : index
    %c0_83 = arith.constant 0 : index
    %76 = vector.load %arg2[%c0_81, %c0_82, %c0_83] : memref<5x32x168xbf16, #tpu.memory_space<vmem>>, vector<1x32x168xbf16>
    %77 = vector.shape_cast %76 : vector<1x32x168xbf16> to vector<32x168xbf16>
    %cst_84 = arith.constant dense<0.000000e+00> : vector<7x168xf32>
    %78 = tpu.matmul %75, %77, %cst_84 {dimension_numbers = #tpu.dot_dimension_numbers<[1], [0], [0], [1], [0, 0, 1, 1], [], []>} : vector<7x32xbf16>, vector<32x168xbf16>, vector<7x168xf32> -> vector<7x168xf32>
    %79 = arith.addf %72, %78 : vector<7x168xf32>
    %c0_85 = arith.constant 0 : index
    %c3_86 = arith.constant 3 : index
    %c0_87 = arith.constant 0 : index
    %c0_88 = arith.constant 0 : index
    %80 = vector.load %arg1[%c0_85, %c3_86, %c0_87, %c0_88] : memref<1x4x8x32xf32, #tpu.memory_space<vmem>>, vector<1x1x7x32xf32>
    %81 = vector.shape_cast %80 : vector<1x1x7x32xf32> to vector<7x32xf32>
    %82 = arith.truncf %81 : vector<7x32xf32> to vector<7x32xbf16>
    %c1_89 = arith.constant 1 : index
    %c0_90 = arith.constant 0 : index
    %c0_91 = arith.constant 0 : index
    %83 = vector.load %arg2[%c1_89, %c0_90, %c0_91] : memref<5x32x168xbf16, #tpu.memory_space<vmem>>, vector<1x32x168xbf16>
    %84 = vector.shape_cast %83 : vector<1x32x168xbf16> to vector<32x168xbf16>
    %cst_92 = arith.constant dense<0.000000e+00> : vector<7x168xf32>
    %85 = tpu.matmul %82, %84, %cst_92 {dimension_numbers = #tpu.dot_dimension_numbers<[1], [0], [0], [1], [0, 0, 1, 1], [], []>} : vector<7x32xbf16>, vector<32x168xbf16>, vector<7x168xf32> -> vector<7x168xf32>
    %86 = arith.addf %79, %85 : vector<7x168xf32>
    %c0_93 = arith.constant 0 : index
    %c0_94 = arith.constant 0 : index
    %c1_95 = arith.constant 1 : index
    %c0_96 = arith.constant 0 : index
    %87 = vector.load %arg1[%c0_93, %c0_94, %c1_95, %c0_96] : memref<1x4x8x32xf32, #tpu.memory_space<vmem>>, vector<1x1x7x32xf32>
    %88 = vector.shape_cast %87 : vector<1x1x7x32xf32> to vector<7x32xf32>
    %89 = arith.truncf %88 : vector<7x32xf32> to vector<7x32xbf16>
    %c2_97 = arith.constant 2 : index
    %c0_98 = arith.constant 0 : index
    %c0_99 = arith.constant 0 : index
    %90 = vector.load %arg2[%c2_97, %c0_98, %c0_99] : memref<5x32x168xbf16, #tpu.memory_space<vmem>>, vector<1x32x168xbf16>
    %91 = vector.shape_cast %90 : vector<1x32x168xbf16> to vector<32x168xbf16>
    %cst_100 = arith.constant dense<0.000000e+00> : vector<7x168xf32>
    %92 = tpu.matmul %89, %91, %cst_100 {dimension_numbers = #tpu.dot_dimension_numbers<[1], [0], [0], [1], [0, 0, 1, 1], [], []>} : vector<7x32xbf16>, vector<32x168xbf16>, vector<7x168xf32> -> vector<7x168xf32>
    %93 = arith.addf %86, %92 : vector<7x168xf32>
    %c0_101 = arith.constant 0 : index
    %c1_102 = arith.constant 1 : index
    %c1_103 = arith.constant 1 : index
    %c0_104 = arith.constant 0 : index
    %94 = vector.load %arg1[%c0_101, %c1_102, %c1_103, %c0_104] : memref<1x4x8x32xf32, #tpu.memory_space<vmem>>, vector<1x1x7x32xf32>
    %95 = vector.shape_cast %94 : vector<1x1x7x32xf32> to vector<7x32xf32>
    %96 = arith.truncf %95 : vector<7x32xf32> to vector<7x32xbf16>
    %c3_105 = arith.constant 3 : index
    %c0_106 = arith.constant 0 : index
    %c0_107 = arith.constant 0 : index
    %97 = vector.load %arg2[%c3_105, %c0_106, %c0_107] : memref<5x32x168xbf16, #tpu.memory_space<vmem>>, vector<1x32x168xbf16>
    %98 = vector.shape_cast %97 : vector<1x32x168xbf16> to vector<32x168xbf16>
    %cst_108 = arith.constant dense<0.000000e+00> : vector<7x168xf32>
    %99 = tpu.matmul %96, %98, %cst_108 {dimension_numbers = #tpu.dot_dimension_numbers<[1], [0], [0], [1], [0, 0, 1, 1], [], []>} : vector<7x32xbf16>, vector<32x168xbf16>, vector<7x168xf32> -> vector<7x168xf32>
    %100 = arith.addf %93, %99 : vector<7x168xf32>
    %c0_109 = arith.constant 0 : index
    %c2_110 = arith.constant 2 : index
    %c1_111 = arith.constant 1 : index
    %c0_112 = arith.constant 0 : index
    %101 = vector.load %arg1[%c0_109, %c2_110, %c1_111, %c0_112] : memref<1x4x8x32xf32, #tpu.memory_space<vmem>>, vector<1x1x7x32xf32>
    %102 = vector.shape_cast %101 : vector<1x1x7x32xf32> to vector<7x32xf32>
    %103 = arith.truncf %102 : vector<7x32xf32> to vector<7x32xbf16>
    %c4_113 = arith.constant 4 : index
    %c0_114 = arith.constant 0 : index
    %c0_115 = arith.constant 0 : index
    %104 = vector.load %arg2[%c4_113, %c0_114, %c0_115] : memref<5x32x168xbf16, #tpu.memory_space<vmem>>, vector<1x32x168xbf16>
    %105 = vector.shape_cast %104 : vector<1x32x168xbf16> to vector<32x168xbf16>
    %cst_116 = arith.constant dense<0.000000e+00> : vector<7x168xf32>
    %106 = tpu.matmul %103, %105, %cst_116 {dimension_numbers = #tpu.dot_dimension_numbers<[1], [0], [0], [1], [0, 0, 1, 1], [], []>} : vector<7x32xbf16>, vector<32x168xbf16>, vector<7x168xf32> -> vector<7x168xf32>
    %107 = arith.addf %100, %106 : vector<7x168xf32>
    %cst_117 = arith.constant 0.000000e+00 : f32
    %108 = vector.broadcast %cst_117 : f32 to vector<7x168xf32>
    %c0_118 = arith.constant 0 : index
    %c3_119 = arith.constant 3 : index
    %c0_120 = arith.constant 0 : index
    %c0_121 = arith.constant 0 : index
    %109 = vector.load %arg1[%c0_118, %c3_119, %c0_120, %c0_121] : memref<1x4x8x32xf32, #tpu.memory_space<vmem>>, vector<1x1x7x32xf32>
    %110 = vector.shape_cast %109 : vector<1x1x7x32xf32> to vector<7x32xf32>
    %111 = arith.truncf %110 : vector<7x32xf32> to vector<7x32xbf16>
    %c0_122 = arith.constant 0 : index
    %c0_123 = arith.constant 0 : index
    %c0_124 = arith.constant 0 : index
    %112 = vector.load %arg2[%c0_122, %c0_123, %c0_124] : memref<5x32x168xbf16, #tpu.memory_space<vmem>>, vector<1x32x168xbf16>
    %113 = vector.shape_cast %112 : vector<1x32x168xbf16> to vector<32x168xbf16>
    %cst_125 = arith.constant dense<0.000000e+00> : vector<7x168xf32>
    %114 = tpu.matmul %111, %113, %cst_125 {dimension_numbers = #tpu.dot_dimension_numbers<[1], [0], [0], [1], [0, 0, 1, 1], [], []>} : vector<7x32xbf16>, vector<32x168xbf16>, vector<7x168xf32> -> vector<7x168xf32>
    %115 = arith.addf %108, %114 : vector<7x168xf32>
    %c0_126 = arith.constant 0 : index
    %c0_127 = arith.constant 0 : index
    %c1_128 = arith.constant 1 : index
    %c0_129 = arith.constant 0 : index
    %116 = vector.load %arg1[%c0_126, %c0_127, %c1_128, %c0_129] : memref<1x4x8x32xf32, #tpu.memory_space<vmem>>, vector<1x1x7x32xf32>
    %117 = vector.shape_cast %116 : vector<1x1x7x32xf32> to vector<7x32xf32>
    %118 = arith.truncf %117 : vector<7x32xf32> to vector<7x32xbf16>
    %c1_130 = arith.constant 1 : index
    %c0_131 = arith.constant 0 : index
    %c0_132 = arith.constant 0 : index
    %119 = vector.load %arg2[%c1_130, %c0_131, %c0_132] : memref<5x32x168xbf16, #tpu.memory_space<vmem>>, vector<1x32x168xbf16>
    %120 = vector.shape_cast %119 : vector<1x32x168xbf16> to vector<32x168xbf16>
    %cst_133 = arith.constant dense<0.000000e+00> : vector<7x168xf32>
    %121 = tpu.matmul %118, %120, %cst_133 {dimension_numbers = #tpu.dot_dimension_numbers<[1], [0], [0], [1], [0, 0, 1, 1], [], []>} : vector<7x32xbf16>, vector<32x168xbf16>, vector<7x168xf32> -> vector<7x168xf32>
    %122 = arith.addf %115, %121 : vector<7x168xf32>
    %c0_134 = arith.constant 0 : index
    %c1_135 = arith.constant 1 : index
    %c1_136 = arith.constant 1 : index
    %c0_137 = arith.constant 0 : index
    %123 = vector.load %arg1[%c0_134, %c1_135, %c1_136, %c0_137] : memref<1x4x8x32xf32, #tpu.memory_space<vmem>>, vector<1x1x7x32xf32>
    %124 = vector.shape_cast %123 : vector<1x1x7x32xf32> to vector<7x32xf32>
    %125 = arith.truncf %124 : vector<7x32xf32> to vector<7x32xbf16>
    %c2_138 = arith.constant 2 : index
    %c0_139 = arith.constant 0 : index
    %c0_140 = arith.constant 0 : index
    %126 = vector.load %arg2[%c2_138, %c0_139, %c0_140] : memref<5x32x168xbf16, #tpu.memory_space<vmem>>, vector<1x32x168xbf16>
    %127 = vector.shape_cast %126 : vector<1x32x168xbf16> to vector<32x168xbf16>
    %cst_141 = arith.constant dense<0.000000e+00> : vector<7x168xf32>
    %128 = tpu.matmul %125, %127, %cst_141 {dimension_numbers = #tpu.dot_dimension_numbers<[1], [0], [0], [1], [0, 0, 1, 1], [], []>} : vector<7x32xbf16>, vector<32x168xbf16>, vector<7x168xf32> -> vector<7x168xf32>
    %129 = arith.addf %122, %128 : vector<7x168xf32>
    %c0_142 = arith.constant 0 : index
    %c2_143 = arith.constant 2 : index
    %c1_144 = arith.constant 1 : index
    %c0_145 = arith.constant 0 : index
    %130 = vector.load %arg1[%c0_142, %c2_143, %c1_144, %c0_145] : memref<1x4x8x32xf32, #tpu.memory_space<vmem>>, vector<1x1x7x32xf32>
    %131 = vector.shape_cast %130 : vector<1x1x7x32xf32> to vector<7x32xf32>
    %132 = arith.truncf %131 : vector<7x32xf32> to vector<7x32xbf16>
    %c3_146 = arith.constant 3 : index
    %c0_147 = arith.constant 0 : index
    %c0_148 = arith.constant 0 : index
    %133 = vector.load %arg2[%c3_146, %c0_147, %c0_148] : memref<5x32x168xbf16, #tpu.memory_space<vmem>>, vector<1x32x168xbf16>
    %134 = vector.shape_cast %133 : vector<1x32x168xbf16> to vector<32x168xbf16>
    %cst_149 = arith.constant dense<0.000000e+00> : vector<7x168xf32>
    %135 = tpu.matmul %132, %134, %cst_149 {dimension_numbers = #tpu.dot_dimension_numbers<[1], [0], [0], [1], [0, 0, 1, 1], [], []>} : vector<7x32xbf16>, vector<32x168xbf16>, vector<7x168xf32> -> vector<7x168xf32>
    %136 = arith.addf %129, %135 : vector<7x168xf32>
    %c0_150 = arith.constant 0 : index
    %c3_151 = arith.constant 3 : index
    %c1_152 = arith.constant 1 : index
    %c0_153 = arith.constant 0 : index
    %137 = vector.load %arg1[%c0_150, %c3_151, %c1_152, %c0_153] : memref<1x4x8x32xf32, #tpu.memory_space<vmem>>, vector<1x1x7x32xf32>
    %138 = vector.shape_cast %137 : vector<1x1x7x32xf32> to vector<7x32xf32>
    %139 = arith.truncf %138 : vector<7x32xf32> to vector<7x32xbf16>
    %c4_154 = arith.constant 4 : index
    %c0_155 = arith.constant 0 : index
    %c0_156 = arith.constant 0 : index
    %140 = vector.load %arg2[%c4_154, %c0_155, %c0_156] : memref<5x32x168xbf16, #tpu.memory_space<vmem>>, vector<1x32x168xbf16>
    %141 = vector.shape_cast %140 : vector<1x32x168xbf16> to vector<32x168xbf16>
    %cst_157 = arith.constant dense<0.000000e+00> : vector<7x168xf32>
    %142 = tpu.matmul %139, %141, %cst_157 {dimension_numbers = #tpu.dot_dimension_numbers<[1], [0], [0], [1], [0, 0, 1, 1], [], []>} : vector<7x32xbf16>, vector<32x168xbf16>, vector<7x168xf32> -> vector<7x168xf32>
    %143 = arith.addf %136, %142 : vector<7x168xf32>
    %144 = arith.maximumf %35, %71 : vector<7x168xf32>
    %145 = vector.extract_strided_slice %144 {offsets = [0, 0], sizes = [7, 84], strides = [1, 1]} : vector<7x168xf32> to vector<7x84xf32>
    %146 = vector.extract_strided_slice %144 {offsets = [0, 84], sizes = [7, 84], strides = [1, 1]} : vector<7x168xf32> to vector<7x84xf32>
    %147 = arith.maximumf %145, %146 : vector<7x84xf32>
    %c0_158 = arith.constant 0 : index
    %c0_159 = arith.constant 0 : index
    %148 = vector.load %arg3[%c0_158, %c0_159] : memref<1x84xf32, #tpu.memory_space<vmem>>, vector<1x84xf32>
    %149 = vector.broadcast %148 : vector<1x84xf32> to vector<7x84xf32>
    %150 = arith.addf %147, %149 : vector<7x84xf32>
    %cst_160 = arith.constant 0.000000e+00 : f32
    %151 = vector.broadcast %cst_160 : f32 to vector<7x84xf32>
    %152 = arith.maximumf %150, %151 : vector<7x84xf32>
    %c0_161 = arith.constant 0 : index
    %c0_162 = arith.constant 0 : index
    %153 = vector.load %arg13[%c0_161, %c0_162] : memref<7x84xf32, #tpu.memory_space<vmem>>, vector<7x84xf32>
    tpu.vector_store %arg13[%c0_161, %c0_162], %152 {strides = array<i32>} : memref<7x84xf32, #tpu.memory_space<vmem>>, vector<7x84xf32>,
    %154 = arith.maximumf %107, %143 : vector<7x168xf32>
    %155 = vector.extract_strided_slice %154 {offsets = [0, 0], sizes = [7, 84], strides = [1, 1]} : vector<7x168xf32> to vector<7x84xf32>
    %156 = vector.extract_strided_slice %154 {offsets = [0, 84], sizes = [7, 84], strides = [1, 1]} : vector<7x168xf32> to vector<7x84xf32>
    %157 = arith.maximumf %155, %156 : vector<7x84xf32>
    %c0_163 = arith.constant 0 : index
    %c0_164 = arith.constant 0 : index
    %158 = vector.load %arg3[%c0_163, %c0_164] : memref<1x84xf32, #tpu.memory_space<vmem>>, vector<1x84xf32>
    %159 = vector.broadcast %158 : vector<1x84xf32> to vector<7x84xf32>
    %160 = arith.addf %157, %159 : vector<7x84xf32>
    %cst_165 = arith.constant 0.000000e+00 : f32
    %161 = vector.broadcast %cst_165 : f32 to vector<7x84xf32>
    %162 = arith.maximumf %160, %161 : vector<7x84xf32>
    %c0_166 = arith.constant 0 : index
    %c0_167 = arith.constant 0 : index
    %163 = vector.load %arg14[%c0_166, %c0_167] : memref<7x84xf32, #tpu.memory_space<vmem>>, vector<7x84xf32>
    tpu.vector_store %arg14[%c0_166, %c0_167], %162 {strides = array<i32>} : memref<7x84xf32, #tpu.memory_space<vmem>>, vector<7x84xf32>,
    %cst_168 = arith.constant 0.000000e+00 : f32
    %164 = vector.broadcast %cst_168 : f32 to vector<5x160xf32>
    %c0_169 = arith.constant 0 : index
    %c0_170 = arith.constant 0 : index
    %165 = vector.load %arg13[%c0_169, %c0_170] : memref<7x84xf32, #tpu.memory_space<vmem>>, vector<5x84xf32>
    %166 = arith.truncf %165 : vector<5x84xf32> to vector<5x84xbf16>
    %c0_171 = arith.constant 0 : index
    %c0_172 = arith.constant 0 : index
    %c0_173 = arith.constant 0 : index
    %167 = vector.load %arg4[%c0_171, %c0_172, %c0_173] : memref<5x84x160xbf16, #tpu.memory_space<vmem>>, vector<1x84x160xbf16>
    %168 = vector.shape_cast %167 : vector<1x84x160xbf16> to vector<84x160xbf16>
    %cst_174 = arith.constant dense<0.000000e+00> : vector<5x160xf32>
    %169 = tpu.matmul %166, %168, %cst_174 {dimension_numbers = #tpu.dot_dimension_numbers<[1], [0], [0], [1], [0, 0, 1, 1], [], []>} : vector<5x84xbf16>, vector<84x160xbf16>, vector<5x160xf32> -> vector<5x160xf32>
    %170 = arith.addf %164, %169 : vector<5x160xf32>
    %c0_175 = arith.constant 0 : index
    %c0_176 = arith.constant 0 : index
    %171 = vector.load %arg14[%c0_175, %c0_176] : memref<7x84xf32, #tpu.memory_space<vmem>>, vector<5x84xf32>
    %172 = arith.truncf %171 : vector<5x84xf32> to vector<5x84xbf16>
    %c1_177 = arith.constant 1 : index
    %c0_178 = arith.constant 0 : index
    %c0_179 = arith.constant 0 : index
    %173 = vector.load %arg4[%c1_177, %c0_178, %c0_179] : memref<5x84x160xbf16, #tpu.memory_space<vmem>>, vector<1x84x160xbf16>
    %174 = vector.shape_cast %173 : vector<1x84x160xbf16> to vector<84x160xbf16>
    %cst_180 = arith.constant dense<0.000000e+00> : vector<5x160xf32>
    %175 = tpu.matmul %172, %174, %cst_180 {dimension_numbers = #tpu.dot_dimension_numbers<[1], [0], [0], [1], [0, 0, 1, 1], [], []>} : vector<5x84xbf16>, vector<84x160xbf16>, vector<5x160xf32> -> vector<5x160xf32>
    %176 = arith.addf %170, %175 : vector<5x160xf32>
    %c1_181 = arith.constant 1 : index
    %c0_182 = arith.constant 0 : index
    %177 = vector.load %arg13[%c1_181, %c0_182] : memref<7x84xf32, #tpu.memory_space<vmem>>, vector<5x84xf32>
    %178 = arith.truncf %177 : vector<5x84xf32> to vector<5x84xbf16>
    %c2_183 = arith.constant 2 : index
    %c0_184 = arith.constant 0 : index
    %c0_185 = arith.constant 0 : index
    %179 = vector.load %arg4[%c2_183, %c0_184, %c0_185] : memref<5x84x160xbf16, #tpu.memory_space<vmem>>, vector<1x84x160xbf16>
    %180 = vector.shape_cast %179 : vector<1x84x160xbf16> to vector<84x160xbf16>
    %cst_186 = arith.constant dense<0.000000e+00> : vector<5x160xf32>
    %181 = tpu.matmul %178, %180, %cst_186 {dimension_numbers = #tpu.dot_dimension_numbers<[1], [0], [0], [1], [0, 0, 1, 1], [], []>} : vector<5x84xbf16>, vector<84x160xbf16>, vector<5x160xf32> -> vector<5x160xf32>
    %182 = arith.addf %176, %181 : vector<5x160xf32>
    %c1_187 = arith.constant 1 : index
    %c0_188 = arith.constant 0 : index
    %183 = vector.load %arg14[%c1_187, %c0_188] : memref<7x84xf32, #tpu.memory_space<vmem>>, vector<5x84xf32>
    %184 = arith.truncf %183 : vector<5x84xf32> to vector<5x84xbf16>
    %c3_189 = arith.constant 3 : index
    %c0_190 = arith.constant 0 : index
    %c0_191 = arith.constant 0 : index
    %185 = vector.load %arg4[%c3_189, %c0_190, %c0_191] : memref<5x84x160xbf16, #tpu.memory_space<vmem>>, vector<1x84x160xbf16>
    %186 = vector.shape_cast %185 : vector<1x84x160xbf16> to vector<84x160xbf16>
    %cst_192 = arith.constant dense<0.000000e+00> : vector<5x160xf32>
    %187 = tpu.matmul %184, %186, %cst_192 {dimension_numbers = #tpu.dot_dimension_numbers<[1], [0], [0], [1], [0, 0, 1, 1], [], []>} : vector<5x84xbf16>, vector<84x160xbf16>, vector<5x160xf32> -> vector<5x160xf32>
    %188 = arith.addf %182, %187 : vector<5x160xf32>
    %c2_193 = arith.constant 2 : index
    %c0_194 = arith.constant 0 : index
    %189 = vector.load %arg13[%c2_193, %c0_194] : memref<7x84xf32, #tpu.memory_space<vmem>>, vector<5x84xf32>
    %190 = arith.truncf %189 : vector<5x84xf32> to vector<5x84xbf16>
    %c4_195 = arith.constant 4 : index
    %c0_196 = arith.constant 0 : index
    %c0_197 = arith.constant 0 : index
    %191 = vector.load %arg4[%c4_195, %c0_196, %c0_197] : memref<5x84x160xbf16, #tpu.memory_space<vmem>>, vector<1x84x160xbf16>
    %192 = vector.shape_cast %191 : vector<1x84x160xbf16> to vector<84x160xbf16>
    %cst_198 = arith.constant dense<0.000000e+00> : vector<5x160xf32>
    %193 = tpu.matmul %190, %192, %cst_198 {dimension_numbers = #tpu.dot_dimension_numbers<[1], [0], [0], [1], [0, 0, 1, 1], [], []>} : vector<5x84xbf16>, vector<84x160xbf16>, vector<5x160xf32> -> vector<5x160xf32>
    %194 = arith.addf %188, %193 : vector<5x160xf32>
    %cst_199 = arith.constant 0.000000e+00 : f32
    %195 = vector.broadcast %cst_199 : f32 to vector<5x160xf32>
    %c0_200 = arith.constant 0 : index
    %c0_201 = arith.constant 0 : index
    %196 = vector.load %arg14[%c0_200, %c0_201] : memref<7x84xf32, #tpu.memory_space<vmem>>, vector<5x84xf32>
    %197 = arith.truncf %196 : vector<5x84xf32> to vector<5x84xbf16>
    %c0_202 = arith.constant 0 : index
    %c0_203 = arith.constant 0 : index
    %c0_204 = arith.constant 0 : index
    %198 = vector.load %arg4[%c0_202, %c0_203, %c0_204] : memref<5x84x160xbf16, #tpu.memory_space<vmem>>, vector<1x84x160xbf16>
    %199 = vector.shape_cast %198 : vector<1x84x160xbf16> to vector<84x160xbf16>
    %cst_205 = arith.constant dense<0.000000e+00> : vector<5x160xf32>
    %200 = tpu.matmul %197, %199, %cst_205 {dimension_numbers = #tpu.dot_dimension_numbers<[1], [0], [0], [1], [0, 0, 1, 1], [], []>} : vector<5x84xbf16>, vector<84x160xbf16>, vector<5x160xf32> -> vector<5x160xf32>
    %201 = arith.addf %195, %200 : vector<5x160xf32>
    %c1_206 = arith.constant 1 : index
    %c0_207 = arith.constant 0 : index
    %202 = vector.load %arg13[%c1_206, %c0_207] : memref<7x84xf32, #tpu.memory_space<vmem>>, vector<5x84xf32>
    %203 = arith.truncf %202 : vector<5x84xf32> to vector<5x84xbf16>
    %c1_208 = arith.constant 1 : index
    %c0_209 = arith.constant 0 : index
    %c0_210 = arith.constant 0 : index
    %204 = vector.load %arg4[%c1_208, %c0_209, %c0_210] : memref<5x84x160xbf16, #tpu.memory_space<vmem>>, vector<1x84x160xbf16>
    %205 = vector.shape_cast %204 : vector<1x84x160xbf16> to vector<84x160xbf16>
    %cst_211 = arith.constant dense<0.000000e+00> : vector<5x160xf32>
    %206 = tpu.matmul %203, %205, %cst_211 {dimension_numbers = #tpu.dot_dimension_numbers<[1], [0], [0], [1], [0, 0, 1, 1], [], []>} : vector<5x84xbf16>, vector<84x160xbf16>, vector<5x160xf32> -> vector<5x160xf32>
    %207 = arith.addf %201, %206 : vector<5x160xf32>
    %c1_212 = arith.constant 1 : index
    %c0_213 = arith.constant 0 : index
    %208 = vector.load %arg14[%c1_212, %c0_213] : memref<7x84xf32, #tpu.memory_space<vmem>>, vector<5x84xf32>
    %209 = arith.truncf %208 : vector<5x84xf32> to vector<5x84xbf16>
    %c2_214 = arith.constant 2 : index
    %c0_215 = arith.constant 0 : index
    %c0_216 = arith.constant 0 : index
    %210 = vector.load %arg4[%c2_214, %c0_215, %c0_216] : memref<5x84x160xbf16, #tpu.memory_space<vmem>>, vector<1x84x160xbf16>
    %211 = vector.shape_cast %210 : vector<1x84x160xbf16> to vector<84x160xbf16>
    %cst_217 = arith.constant dense<0.000000e+00> : vector<5x160xf32>
    %212 = tpu.matmul %209, %211, %cst_217 {dimension_numbers = #tpu.dot_dimension_numbers<[1], [0], [0], [1], [0, 0, 1, 1], [], []>} : vector<5x84xbf16>, vector<84x160xbf16>, vector<5x160xf32> -> vector<5x160xf32>
    %213 = arith.addf %207, %212 : vector<5x160xf32>
    %c2_218 = arith.constant 2 : index
    %c0_219 = arith.constant 0 : index
    %214 = vector.load %arg13[%c2_218, %c0_219] : memref<7x84xf32, #tpu.memory_space<vmem>>, vector<5x84xf32>
    %215 = arith.truncf %214 : vector<5x84xf32> to vector<5x84xbf16>
    %c3_220 = arith.constant 3 : index
    %c0_221 = arith.constant 0 : index
    %c0_222 = arith.constant 0 : index
    %216 = vector.load %arg4[%c3_220, %c0_221, %c0_222] : memref<5x84x160xbf16, #tpu.memory_space<vmem>>, vector<1x84x160xbf16>
    %217 = vector.shape_cast %216 : vector<1x84x160xbf16> to vector<84x160xbf16>
    %cst_223 = arith.constant dense<0.000000e+00> : vector<5x160xf32>
    %218 = tpu.matmul %215, %217, %cst_223 {dimension_numbers = #tpu.dot_dimension_numbers<[1], [0], [0], [1], [0, 0, 1, 1], [], []>} : vector<5x84xbf16>, vector<84x160xbf16>, vector<5x160xf32> -> vector<5x160xf32>
    %219 = arith.addf %213, %218 : vector<5x160xf32>
    %c2_224 = arith.constant 2 : index
    %c0_225 = arith.constant 0 : index
    %220 = vector.load %arg14[%c2_224, %c0_225] : memref<7x84xf32, #tpu.memory_space<vmem>>, vector<5x84xf32>
    %221 = arith.truncf %220 : vector<5x84xf32> to vector<5x84xbf16>
    %c4_226 = arith.constant 4 : index
    %c0_227 = arith.constant 0 : index
    %c0_228 = arith.constant 0 : index
    %222 = vector.load %arg4[%c4_226, %c0_227, %c0_228] : memref<5x84x160xbf16, #tpu.memory_space<vmem>>, vector<1x84x160xbf16>
    %223 = vector.shape_cast %222 : vector<1x84x160xbf16> to vector<84x160xbf16>
    %cst_229 = arith.constant dense<0.000000e+00> : vector<5x160xf32>
    %224 = tpu.matmul %221, %223, %cst_229 {dimension_numbers = #tpu.dot_dimension_numbers<[1], [0], [0], [1], [0, 0, 1, 1], [], []>} : vector<5x84xbf16>, vector<84x160xbf16>, vector<5x160xf32> -> vector<5x160xf32>
    %225 = arith.addf %219, %224 : vector<5x160xf32>
    %226 = arith.maximumf %194, %225 : vector<5x160xf32>
    %227 = vector.extract_strided_slice %226 {offsets = [0, 0], sizes = [5, 80], strides = [1, 1]} : vector<5x160xf32> to vector<5x80xf32>
    %228 = vector.extract_strided_slice %226 {offsets = [0, 80], sizes = [5, 80], strides = [1, 1]} : vector<5x160xf32> to vector<5x80xf32>
    %229 = arith.maximumf %227, %228 : vector<5x80xf32>
    %c0_230 = arith.constant 0 : index
    %c0_231 = arith.constant 0 : index
    %230 = vector.load %arg5[%c0_230, %c0_231] : memref<1x80xf32, #tpu.memory_space<vmem>>, vector<1x80xf32>
    %231 = vector.broadcast %230 : vector<1x80xf32> to vector<5x80xf32>
    %232 = arith.addf %229, %231 : vector<5x80xf32>
    %cst_232 = arith.constant 0.000000e+00 : f32
    %233 = vector.broadcast %cst_232 : f32 to vector<5x80xf32>
    %234 = arith.maximumf %232, %233 : vector<5x80xf32>
    %c0_233 = arith.constant 0 : index
    %c0_234 = arith.constant 0 : index
    %235 = vector.load %arg15[%c0_233, %c0_234] : memref<5x80xf32, #tpu.memory_space<vmem>>, vector<5x80xf32>
    tpu.vector_store %arg15[%c0_233, %c0_234], %234 {strides = array<i32>} : memref<5x80xf32, #tpu.memory_space<vmem>>, vector<5x80xf32>,
    %cst_235 = arith.constant 0.000000e+00 : f32
    %236 = vector.broadcast %cst_235 : f32 to vector<1x120xf32>
    %c0_236 = arith.constant 0 : index
    %c0_237 = arith.constant 0 : index
    %237 = vector.load %arg15[%c0_236, %c0_237] : memref<5x80xf32, #tpu.memory_space<vmem>>, vector<1x80xf32>
    %238 = arith.truncf %237 : vector<1x80xf32> to vector<1x80xbf16>
    %c0_238 = arith.constant 0 : index
    %c0_239 = arith.constant 0 : index
    %c0_240 = arith.constant 0 : index
    %239 = vector.load %arg6[%c0_238, %c0_239, %c0_240] : memref<5x80x120xbf16, #tpu.memory_space<vmem>>, vector<1x80x120xbf16>
    %240 = vector.shape_cast %239 : vector<1x80x120xbf16> to vector<80x120xbf16>
    %cst_241 = arith.constant dense<0.000000e+00> : vector<1x120xf32>
    %241 = tpu.matmul %238, %240, %cst_241 {dimension_numbers = #tpu.dot_dimension_numbers<[1], [0], [0], [1], [0, 0, 1, 1], [], []>} : vector<1x80xbf16>, vector<80x120xbf16>, vector<1x120xf32> -> vector<1x120xf32>
    %242 = arith.addf %236, %241 : vector<1x120xf32>
    %c1_242 = arith.constant 1 : index
    %c0_243 = arith.constant 0 : index
    %243 = vector.load %arg15[%c1_242, %c0_243] : memref<5x80xf32, #tpu.memory_space<vmem>>, vector<1x80xf32>
    %244 = arith.truncf %243 : vector<1x80xf32> to vector<1x80xbf16>
    %c1_244 = arith.constant 1 : index
    %c0_245 = arith.constant 0 : index
    %c0_246 = arith.constant 0 : index
    %245 = vector.load %arg6[%c1_244, %c0_245, %c0_246] : memref<5x80x120xbf16, #tpu.memory_space<vmem>>, vector<1x80x120xbf16>
    %246 = vector.shape_cast %245 : vector<1x80x120xbf16> to vector<80x120xbf16>
    %cst_247 = arith.constant dense<0.000000e+00> : vector<1x120xf32>
    %247 = tpu.matmul %244, %246, %cst_247 {dimension_numbers = #tpu.dot_dimension_numbers<[1], [0], [0], [1], [0, 0, 1, 1], [], []>} : vector<1x80xbf16>, vector<80x120xbf16>, vector<1x120xf32> -> vector<1x120xf32>
    %248 = arith.addf %242, %247 : vector<1x120xf32>
    %c2_248 = arith.constant 2 : index
    %c0_249 = arith.constant 0 : index
    %249 = vector.load %arg15[%c2_248, %c0_249] : memref<5x80xf32, #tpu.memory_space<vmem>>, vector<1x80xf32>
    %250 = arith.truncf %249 : vector<1x80xf32> to vector<1x80xbf16>
    %c2_250 = arith.constant 2 : index
    %c0_251 = arith.constant 0 : index
    %c0_252 = arith.constant 0 : index
    %251 = vector.load %arg6[%c2_250, %c0_251, %c0_252] : memref<5x80x120xbf16, #tpu.memory_space<vmem>>, vector<1x80x120xbf16>
    %252 = vector.shape_cast %251 : vector<1x80x120xbf16> to vector<80x120xbf16>
    %cst_253 = arith.constant dense<0.000000e+00> : vector<1x120xf32>
    %253 = tpu.matmul %250, %252, %cst_253 {dimension_numbers = #tpu.dot_dimension_numbers<[1], [0], [0], [1], [0, 0, 1, 1], [], []>} : vector<1x80xbf16>, vector<80x120xbf16>, vector<1x120xf32> -> vector<1x120xf32>
    %254 = arith.addf %248, %253 : vector<1x120xf32>
    %c3_254 = arith.constant 3 : index
    %c0_255 = arith.constant 0 : index
    %255 = vector.load %arg15[%c3_254, %c0_255] : memref<5x80xf32, #tpu.memory_space<vmem>>, vector<1x80xf32>
    %256 = arith.truncf %255 : vector<1x80xf32> to vector<1x80xbf16>
    %c3_256 = arith.constant 3 : index
    %c0_257 = arith.constant 0 : index
    %c0_258 = arith.constant 0 : index
    %257 = vector.load %arg6[%c3_256, %c0_257, %c0_258] : memref<5x80x120xbf16, #tpu.memory_space<vmem>>, vector<1x80x120xbf16>
    %258 = vector.shape_cast %257 : vector<1x80x120xbf16> to vector<80x120xbf16>
    %cst_259 = arith.constant dense<0.000000e+00> : vector<1x120xf32>
    %259 = tpu.matmul %256, %258, %cst_259 {dimension_numbers = #tpu.dot_dimension_numbers<[1], [0], [0], [1], [0, 0, 1, 1], [], []>} : vector<1x80xbf16>, vector<80x120xbf16>, vector<1x120xf32> -> vector<1x120xf32>
    %260 = arith.addf %254, %259 : vector<1x120xf32>
    %c4_260 = arith.constant 4 : index
    %c0_261 = arith.constant 0 : index
    %261 = vector.load %arg15[%c4_260, %c0_261] : memref<5x80xf32, #tpu.memory_space<vmem>>, vector<1x80xf32>
    %262 = arith.truncf %261 : vector<1x80xf32> to vector<1x80xbf16>
    %c4_262 = arith.constant 4 : index
    %c0_263 = arith.constant 0 : index
    %c0_264 = arith.constant 0 : index
    %263 = vector.load %arg6[%c4_262, %c0_263, %c0_264] : memref<5x80x120xbf16, #tpu.memory_space<vmem>>, vector<1x80x120xbf16>
    %264 = vector.shape_cast %263 : vector<1x80x120xbf16> to vector<80x120xbf16>
    %cst_265 = arith.constant dense<0.000000e+00> : vector<1x120xf32>
    %265 = tpu.matmul %262, %264, %cst_265 {dimension_numbers = #tpu.dot_dimension_numbers<[1], [0], [0], [1], [0, 0, 1, 1], [], []>} : vector<1x80xbf16>, vector<80x120xbf16>, vector<1x120xf32> -> vector<1x120xf32>
    %266 = arith.addf %260, %265 : vector<1x120xf32>
    %c0_266 = arith.constant 0 : index
    %c0_267 = arith.constant 0 : index
    %267 = vector.load %arg7[%c0_266, %c0_267] : memref<1x120xf32, #tpu.memory_space<vmem>>, vector<1x120xf32>
    %268 = arith.addf %266, %267 : vector<1x120xf32>
    %cst_268 = arith.constant 0.000000e+00 : f32
    %269 = vector.broadcast %cst_268 : f32 to vector<1x120xf32>
    %270 = arith.maximumf %268, %269 : vector<1x120xf32>
    %271 = arith.truncf %270 : vector<1x120xf32> to vector<1x120xbf16>
    %c0_269 = arith.constant 0 : index
    %c0_270 = arith.constant 0 : index
    %272 = vector.load %arg8[%c0_269, %c0_270] : memref<120x84xbf16, #tpu.memory_space<vmem>>, vector<120x84xbf16>
    %cst_271 = arith.constant dense<0.000000e+00> : vector<1x84xf32>
    %273 = tpu.matmul %271, %272, %cst_271 {dimension_numbers = #tpu.dot_dimension_numbers<[1], [0], [0], [1], [0, 0, 1, 1], [], []>} : vector<1x120xbf16>, vector<120x84xbf16>, vector<1x84xf32> -> vector<1x84xf32>
    %c0_272 = arith.constant 0 : index
    %c0_273 = arith.constant 0 : index
    %274 = vector.load %arg9[%c0_272, %c0_273] : memref<1x84xf32, #tpu.memory_space<vmem>>, vector<1x84xf32>
    %275 = arith.addf %273, %274 : vector<1x84xf32>
    %cst_274 = arith.constant 0.000000e+00 : f32
    %276 = vector.broadcast %cst_274 : f32 to vector<1x84xf32>
    %277 = arith.maximumf %275, %276 : vector<1x84xf32>
    %278 = arith.truncf %277 : vector<1x84xf32> to vector<1x84xbf16>
    %c0_275 = arith.constant 0 : index
    %c0_276 = arith.constant 0 : index
    %279 = vector.load %arg10[%c0_275, %c0_276] : memref<84x10xbf16, #tpu.memory_space<vmem>>, vector<84x10xbf16>
    %cst_277 = arith.constant dense<0.000000e+00> : vector<1x10xf32>
    %280 = tpu.matmul %278, %279, %cst_277 {dimension_numbers = #tpu.dot_dimension_numbers<[1], [0], [0], [1], [0, 0, 1, 1], [], []>} : vector<1x84xbf16>, vector<84x10xbf16>, vector<1x10xf32> -> vector<1x10xf32>
    %c0_278 = arith.constant 0 : index
    %c0_279 = arith.constant 0 : index
    %281 = vector.load %arg11[%c0_278, %c0_279] : memref<1x10xf32, #tpu.memory_space<vmem>>, vector<1x10xf32>
    %282 = arith.addf %280, %281 : vector<1x10xf32>
    %c0_280 = arith.constant 0 : index
    %c0_281 = arith.constant 0 : index
    %c0_282 = arith.constant 0 : index
    %283 = vector.load %arg12[%c0_280, %c0_281, %c0_282] : memref<1x1x10xf32, #tpu.memory_space<vmem>>, vector<1x1x10xf32>
    %284 = vector.shape_cast %283 : vector<1x1x10xf32> to vector<1x10xf32>
    %285 = vector.shape_cast %282 : vector<1x10xf32> to vector<1x1x10xf32>
    tpu.vector_store %arg12[%c0_280, %c0_281, %c0_282], %285 {strides = array<i32>} : memref<1x1x10xf32, #tpu.memory_space<vmem>>, vector<1x1x10xf32>,
    return
  }
  func.func @transform_0(%arg0: i32) -> (i32, i32, i32, i32) {
    %c0_i32 = arith.constant 0 : i32
    %c0_i32_0 = arith.constant 0 : i32
    %c0_i32_1 = arith.constant 0 : i32
    %c0_i32_2 = arith.constant 0 : i32
    return %arg0, %c0_i32, %c0_i32_0, %c0_i32_1 : i32, i32, i32, i32
  }
  func.func @transform_1(%arg0: i32) -> (i32, i32, i32) {
    %c0_i32 = arith.constant 0 : i32
    %c0_i32_0 = arith.constant 0 : i32
    %c0_i32_1 = arith.constant 0 : i32
    %c0_i32_2 = arith.constant 0 : i32
    return %c0_i32, %c0_i32_0, %c0_i32_1 : i32, i32, i32
  }
  func.func @transform_2(%arg0: i32) -> (i32, i32) {
    %c0_i32 = arith.constant 0 : i32
    %c0_i32_0 = arith.constant 0 : i32
    %c0_i32_1 = arith.constant 0 : i32
    return %c0_i32, %c0_i32_0 : i32, i32
  }
  func.func @transform_3(%arg0: i32) -> (i32, i32, i32) {
    %c0_i32 = arith.constant 0 : i32
    %c0_i32_0 = arith.constant 0 : i32
    %c0_i32_1 = arith.constant 0 : i32
    %c0_i32_2 = arith.constant 0 : i32
    return %c0_i32, %c0_i32_0, %c0_i32_1 : i32, i32, i32
  }
  func.func @transform_4(%arg0: i32) -> (i32, i32) {
    %c0_i32 = arith.constant 0 : i32
    %c0_i32_0 = arith.constant 0 : i32
    %c0_i32_1 = arith.constant 0 : i32
    return %c0_i32, %c0_i32_0 : i32, i32
  }
  func.func @transform_5(%arg0: i32) -> (i32, i32, i32) {
    %c0_i32 = arith.constant 0 : i32
    %c0_i32_0 = arith.constant 0 : i32
    %c0_i32_1 = arith.constant 0 : i32
    %c0_i32_2 = arith.constant 0 : i32
    return %c0_i32, %c0_i32_0, %c0_i32_1 : i32, i32, i32
  }
  func.func @transform_6(%arg0: i32) -> (i32, i32) {
    %c0_i32 = arith.constant 0 : i32
    %c0_i32_0 = arith.constant 0 : i32
    %c0_i32_1 = arith.constant 0 : i32
    return %c0_i32, %c0_i32_0 : i32, i32
  }
  func.func @transform_7(%arg0: i32) -> (i32, i32) {
    %c0_i32 = arith.constant 0 : i32
    %c0_i32_0 = arith.constant 0 : i32
    %c0_i32_1 = arith.constant 0 : i32
    return %c0_i32, %c0_i32_0 : i32, i32
  }
  func.func @transform_8(%arg0: i32) -> (i32, i32) {
    %c0_i32 = arith.constant 0 : i32
    %c0_i32_0 = arith.constant 0 : i32
    %c0_i32_1 = arith.constant 0 : i32
    return %c0_i32, %c0_i32_0 : i32, i32
  }
  func.func @transform_9(%arg0: i32) -> (i32, i32) {
    %c0_i32 = arith.constant 0 : i32
    %c0_i32_0 = arith.constant 0 : i32
    %c0_i32_1 = arith.constant 0 : i32
    return %c0_i32, %c0_i32_0 : i32, i32
  }
  func.func @transform_10(%arg0: i32) -> (i32, i32) {
    %c0_i32 = arith.constant 0 : i32
    %c0_i32_0 = arith.constant 0 : i32
    %c0_i32_1 = arith.constant 0 : i32
    return %c0_i32, %c0_i32_0 : i32, i32
  }
  func.func @transform_11(%arg0: i32) -> (i32, i32, i32) {
    %c0_i32 = arith.constant 0 : i32
    %c0_i32_0 = arith.constant 0 : i32
    %c0_i32_1 = arith.constant 0 : i32
    return %arg0, %c0_i32, %c0_i32_0 : i32, i32, i32
  }
}

</mosaic_0001>

<llo_original>
// kernel: lenet_forward.1
$region0: #{lenet_forward.1}
  #allocation0 [shape = 'u32[]', space=smem, size = 0x4, offset = 0x4, fixed_abs, tag = 'smem constant byte address 0x4 - core index']
  #allocation1 [shape = 'u32[72,128]{1,0:T(1,128)}', space=vmem, size = 0x9000, scoped, tag = 'internal scratch']
  #allocation2 [shape = 'f32[7,84]{1,0:T(8,128)}', space=vmem, size = 0x1000, scoped, tag = 'scratch operand']
  #allocation3 [shape = 'f32[7,84]{1,0:T(8,128)}', space=vmem, size = 0x1000, scoped, tag = 'scratch operand']
  #allocation4 [shape = 'f32[5,80]{1,0:T(8,128)}', space=vmem, size = 0x1000, scoped, tag = 'scratch operand']
  %s0 = inlined_call_operand.vmem [shape: f32[2,4,8,32], index: 0, kind: input, shape index: {}]
  %s1 = inlined_call_operand.vmem [shape: bf16[5,32,168], index: 1, kind: input, shape index: {}]
  %s2 = inlined_call_operand.vmem [shape: f32[1,84], index: 2, kind: input, shape index: {}]
  %s3 = inlined_call_operand.vmem [shape: bf16[5,84,160], index: 3, kind: input, shape index: {}]
  %s4 = inlined_call_operand.vmem [shape: f32[1,80], index: 4, kind: input, shape index: {}]
  %s5 = inlined_call_operand.vmem [shape: bf16[5,80,120], index: 5, kind: input, shape index: {}]
  %s6 = inlined_call_operand.vmem [shape: f32[1,120], index: 6, kind: input, shape index: {}]
  %s7 = inlined_call_operand.vmem [shape: bf16[120,84], index: 7, kind: input, shape index: {}]
  %s8 = inlined_call_operand.vmem [shape: f32[1,84], index: 8, kind: input, shape index: {}]
  %s9 = inlined_call_operand.vmem [shape: bf16[84,10], index: 9, kind: input, shape index: {}]
  %s10 = inlined_call_operand.vmem [shape: f32[1,10], index: 10, kind: input, shape index: {}]
  %s11 = inlined_call_operand.hbm [shape: f32[2,1,10], index: 11, kind: output, shape index: {}]
  %s12 = sld [smem:[#allocation0]]
  $region77: #{lenet_forward.1} parent=0
    _
  %s14 = ssub.s32 1, %s12
  %s15 = scalar_select 0, %s14, %s12
  $region1: #{lenet_forward.1} parent=0
    #allocation5 [shape = 'u8[1024]{0}', space=vmem, size = 0x400, scoped, tag = 'output window, operand 0']
    #allocation6 [shape = 's32[2]{0}', space=sflag, size = 0x8, scoped, tag = 'scoped memory for lenet_forward.1']
    %16 = vsyncpa [#allocation6], 0
    %s17 = scalar_lea.sflag [#allocation6], 1
    %18 = vsyncpa %s17, 0
    loop: start=0, step=1, limit=4
    $region2: #{lenet_forward.1} parent=1 // loop_pre_header
      _
    $region3: #{lenet_forward.1} parent=1 // loop_header
      %s20 = sphi 0, %s24
      %p21 = scmp.ge.s32.totalorder %s20, 4
      %s30 = sphi 0, %s32
      %s33 = sphi 0, %s30
      %s34 = sphi 0, %s33
      %s50 = sphi 0, %s34
      %s54 = sphi 0, %s54
      %s56 = sphi 0, %s54
      %s57 = sphi 0, %s56
      %s71 = sphi 0, %s57
      %s75 = sphi 0, %s75
      %s77 = sphi 0, %s75
      %s78 = sphi 0, %s77
      %s92 = sphi 0, %s78
      %s96 = sphi 0, %s96
      %s98 = sphi 0, %s96
      %s99 = sphi 0, %s98
      %s113 = sphi 0, %s99
      %s117 = sphi 0, %s117
      %s119 = sphi 0, %s117
      %s120 = sphi 0, %s119
      %s134 = sphi 0, %s120
      %s138 = sphi 0, %s138
      %s140 = sphi 0, %s138
      %s141 = sphi 0, %s140
      %s155 = sphi 0, %s141
      %s159 = sphi 0, %s159
      %s161 = sphi 0, %s159
      %s162 = sphi 0, %s161
      %s176 = sphi 0, %s162
      %s180 = sphi 0, %s180
      %s182 = sphi 0, %s180
      %s183 = sphi 0, %s182
      %s197 = sphi 0, %s183
      %s201 = sphi 0, %s201
      %s203 = sphi 0, %s201
      %s204 = sphi 0, %s203
      %s218 = sphi 0, %s204
      %s222 = sphi 0, %s222
      %s224 = sphi 0, %s222
      %s225 = sphi 0, %s224
      %s239 = sphi 0, %s225
      %s243 = sphi 0, %s243
      %s245 = sphi 0, %s243
      %s246 = sphi 0, %s245
      %s260 = sphi 0, %s246
      %s266 = sphi 0, %s268
      %s269 = sphi 0, %s266
      %s270 = sphi 0, %s269
      %s286 = sphi 0, %s270
    $region4: #{lenet_forward.1} parent=1 // loop_header_branch
      %23 = sbr.rel (%p21) target = $region8
    $region5: #{lenet_forward.1} parent=1 // loop_body
      %s25 = ssub.s32 %s20, 1
      %s26 = ssub.s32 %s20, 2
      %s27 = sadd.s32 %s20, 1
      %s28 = ssub.s32 %s20, %s27
      %p29 = scmp.eq.s32.totalorder %s28, 0
      %s31 = sadd.s32 %s30, 1
      %s32 = scalar_select %p29, %s30, %s31
      %p35 = pneg %p29
      %p36 = scmp.eq.s32.totalorder %s20, 1
      %p37 = por %p35, %p36
      %p38 = scmp.ne.s32.totalorder %s30, %s33
      %p39 = scmp.eq.s32.totalorder %s20, 0
      %p40 = por %p38, %p39
      %p41 = scmp.ne.s32.totalorder %s30, %s33
      %p42 = scmp.eq.s32.totalorder %s25, 1
      %p43 = por %p41, %p42
      %p44 = scmp.ne.s32.totalorder %s33, %s34
      %p45 = scmp.eq.s32.totalorder %s25, 0
      %p46 = por %p44, %p45
      %p47 = scmp.ne.s32.totalorder %s33, %s34
      %p48 = scmp.eq.s32.totalorder %s26, 1
      %p49 = por %p47, %p48
      %p51 = scmp.ne.s32.totalorder %s34, %s50
      %p52 = scmp.eq.s32.totalorder %s26, 0
      %p53 = por %p51, %p52
      %s55 = sadd.s32 %s54, 1
      %p58 = scmp.eq.s32.totalorder %s20, 1
      %p59 = scmp.ne.s32.totalorder %s54, %s56
      %p60 = scmp.eq.s32.totalorder %s20, 0
      %p61 = por %p59, %p60
      %p62 = scmp.ne.s32.totalorder %s54, %s56
      %p63 = scmp.eq.s32.totalorder %s25, 1
      %p64 = por %p62, %p63
      %p65 = scmp.ne.s32.totalorder %s56, %s57
      %p66 = scmp.eq.s32.totalorder %s25, 0
      %p67 = por %p65, %p66
      %p68 = scmp.ne.s32.totalorder %s56, %s57
      %p69 = scmp.eq.s32.totalorder %s26, 1
      %p70 = por %p68, %p69
      %p72 = scmp.ne.s32.totalorder %s57, %s71
      %p73 = scmp.eq.s32.totalorder %s26, 0
      %p74 = por %p72, %p73
      %s76 = sadd.s32 %s75, 1
      %p79 = scmp.eq.s32.totalorder %s20, 1
      %p80 = scmp.ne.s32.totalorder %s75, %s77
      %p81 = scmp.eq.s32.totalorder %s20, 0
      %p82 = por %p80, %p81
      %p83 = scmp.ne.s32.totalorder %s75, %s77
      %p84 = scmp.eq.s32.totalorder %s25, 1
      %p85 = por %p83, %p84
      %p86 = scmp.ne.s32.totalorder %s77, %s78
      %p87 = scmp.eq.s32.totalorder %s25, 0
      %p88 = por %p86, %p87
      %p89 = scmp.ne.s32.totalorder %s77, %s78
      %p90 = scmp.eq.s32.totalorder %s26, 1
      %p91 = por %p89, %p90
      %p93 = scmp.ne.s32.totalorder %s78, %s92
      %p94 = scmp.eq.s32.totalorder %s26, 0
      %p95 = por %p93, %p94
      %s97 = sadd.s32 %s96, 1
      %p100 = scmp.eq.s32.totalorder %s20, 1
      %p101 = scmp.ne.s32.totalorder %s96, %s98
      %p102 = scmp.eq.s32.totalorder %s20, 0
      %p103 = por %p101, %p102
      %p104 = scmp.ne.s32.totalorder %s96, %s98
      %p105 = scmp.eq.s32.totalorder %s25, 1
      %p106 = por %p104, %p105
      %p107 = scmp.ne.s32.totalorder %s98, %s99
      %p108 = scmp.eq.s32.totalorder %s25, 0
      %p109 = por %p107, %p108
      %p110 = scmp.ne.s32.totalorder %s98, %s99
      %p111 = scmp.eq.s32.totalorder %s26, 1
      %p112 = por %p110, %p111
      %p114 = scmp.ne.s32.totalorder %s99, %s113
      %p115 = scmp.eq.s32.totalorder %s26, 0
      %p116 = por %p114, %p115
      %s118 = sadd.s32 %s117, 1
      %p121 = scmp.eq.s32.totalorder %s20, 1
      %p122 = scmp.ne.s32.totalorder %s117, %s119
      %p123 = scmp.eq.s32.totalorder %s20, 0
      %p124 = por %p122, %p123
      %p125 = scmp.ne.s32.totalorder %s117, %s119
      %p126 = scmp.eq.s32.totalorder %s25, 1
      %p127 = por %p125, %p126
      %p128 = scmp.ne.s32.totalorder %s119, %s120
      %p129 = scmp.eq.s32.totalorder %s25, 0
      %p130 = por %p128, %p129
      %p131 = scmp.ne.s32.totalorder %s119, %s120
      %p132 = scmp.eq.s32.totalorder %s26, 1
      %p133 = por %p131, %p132
      %p135 = scmp.ne.s32.totalorder %s120, %s134
      %p136 = scmp.eq.s32.totalorder %s26, 0
      %p137 = por %p135, %p136
      %s139 = sadd.s32 %s138, 1
      %p142 = scmp.eq.s32.totalorder %s20, 1
      %p143 = scmp.ne.s32.totalorder %s138, %s140
      %p144 = scmp.eq.s32.totalorder %s20, 0
      %p145 = por %p143, %p144
      %p146 = scmp.ne.s32.totalorder %s138, %s140
      %p147 = scmp.eq.s32.totalorder %s25, 1
      %p148 = por %p146, %p147
      %p149 = scmp.ne.s32.totalorder %s140, %s141
      %p150 = scmp.eq.s32.totalorder %s25, 0
      %p151 = por %p149, %p150
      %p152 = scmp.ne.s32.totalorder %s140, %s141
      %p153 = scmp.eq.s32.totalorder %s26, 1
      %p154 = por %p152, %p153
      %p156 = scmp.ne.s32.totalorder %s141, %s155
      %p157 = scmp.eq.s32.totalorder %s26, 0
      %p158 = por %p156, %p157
      %s160 = sadd.s32 %s159, 1
      %p163 = scmp.eq.s32.totalorder %s20, 1
      %p164 = scmp.ne.s32.totalorder %s159, %s161
      %p165 = scmp.eq.s32.totalorder %s20, 0
      %p166 = por %p164, %p165
      %p167 = scmp.ne.s32.totalorder %s159, %s161
      %p168 = scmp.eq.s32.totalorder %s25, 1
      %p169 = por %p167, %p168
      %p170 = scmp.ne.s32.totalorder %s161, %s162
      %p171 = scmp.eq.s32.totalorder %s25, 0
      %p172 = por %p170, %p171
      %p173 = scmp.ne.s32.totalorder %s161, %s162
      %p174 = scmp.eq.s32.totalorder %s26, 1
      %p175 = por %p173, %p174
      %p177 = scmp.ne.s32.totalorder %s162, %s176
      %p178 = scmp.eq.s32.totalorder %s26, 0
      %p179 = por %p177, %p178
      %s181 = sadd.s32 %s180, 1
      %p184 = scmp.eq.s32.totalorder %s20, 1
      %p185 = scmp.ne.s32.totalorder %s180, %s182
      %p186 = scmp.eq.s32.totalorder %s20, 0
      %p187 = por %p185, %p186
      %p188 = scmp.ne.s32.totalorder %s180, %s182
      %p189 = scmp.eq.s32.totalorder %s25, 1
      %p190 = por %p188, %p189
      %p191 = scmp.ne.s32.totalorder %s182, %s183
      %p192 = scmp.eq.s32.totalorder %s25, 0
      %p193 = por %p191, %p192
      %p194 = scmp.ne.s32.totalorder %s182, %s183
      %p195 = scmp.eq.s32.totalorder %s26, 1
      %p196 = por %p194, %p195
      %p198 = scmp.ne.s32.totalorder %s183, %s197
      %p199 = scmp.eq.s32.totalorder %s26, 0
      %p200 = por %p198, %p199
      %s202 = sadd.s32 %s201, 1
      %p205 = scmp.eq.s32.totalorder %s20, 1
      %p206 = scmp.ne.s32.totalorder %s201, %s203
      %p207 = scmp.eq.s32.totalorder %s20, 0
      %p208 = por %p206, %p207
      %p209 = scmp.ne.s32.totalorder %s201, %s203
      %p210 = scmp.eq.s32.totalorder %s25, 1
      %p211 = por %p209, %p210
      %p212 = scmp.ne.s32.totalorder %s203, %s204
      %p213 = scmp.eq.s32.totalorder %s25, 0
      %p214 = por %p212, %p213
      %p215 = scmp.ne.s32.totalorder %s203, %s204
      %p216 = scmp.eq.s32.totalorder %s26, 1
      %p217 = por %p215, %p216
      %p219 = scmp.ne.s32.totalorder %s204, %s218
      %p220 = scmp.eq.s32.totalorder %s26, 0
      %p221 = por %p219, %p220
      %s223 = sadd.s32 %s222, 1
      %p226 = scmp.eq.s32.totalorder %s20, 1
      %p227 = scmp.ne.s32.totalorder %s222, %s224
      %p228 = scmp.eq.s32.totalorder %s20, 0
      %p229 = por %p227, %p228
      %p230 = scmp.ne.s32.totalorder %s222, %s224
      %p231 = scmp.eq.s32.totalorder %s25, 1
      %p232 = por %p230, %p231
      %p233 = scmp.ne.s32.totalorder %s224, %s225
      %p234 = scmp.eq.s32.totalorder %s25, 0
      %p235 = por %p233, %p234
      %p236 = scmp.ne.s32.totalorder %s224, %s225
      %p237 = scmp.eq.s32.totalorder %s26, 1
      %p238 = por %p236, %p237
      %p240 = scmp.ne.s32.totalorder %s225, %s239
      %p241 = scmp.eq.s32.totalorder %s26, 0
      %p242 = por %p240, %p241
      %s244 = sadd.s32 %s243, 1
      %p247 = scmp.eq.s32.totalorder %s20, 1
      %p248 = scmp.ne.s32.totalorder %s243, %s245
      %p249 = scmp.eq.s32.totalorder %s20, 0
      %p250 = por %p248, %p249
      %p251 = scmp.ne.s32.totalorder %s243, %s245
      %p252 = scmp.eq.s32.totalorder %s25, 1
      %p253 = por %p251, %p252
      %p254 = scmp.ne.s32.totalorder %s245, %s246
      %p255 = scmp.eq.s32.totalorder %s25, 0
      %p256 = por %p254, %p255
      %p257 = scmp.ne.s32.totalorder %s245, %s246
      %p258 = scmp.eq.s32.totalorder %s26, 1
      %p259 = por %p257, %p258
      %p261 = scmp.ne.s32.totalorder %s246, %s260
      %p262 = scmp.eq.s32.totalorder %s26, 0
      %p263 = por %p261, %p262
      %s264 = ssub.s32 %s20, %s27
      %p265 = scmp.eq.s32.totalorder %s264, 0
      %s267 = sadd.s32 %s266, 1
      %s268 = scalar_select %p265, %s266, %s267
      %p271 = pneg %p265
      %p272 = scmp.eq.s32.totalorder %s20, 1
      %p273 = por %p271, %p272
      %p274 = scmp.ne.s32.totalorder %s266, %s269
      %p275 = scmp.eq.s32.totalorder %s20, 0
      %p276 = por %p274, %p275
      %p277 = scmp.ne.s32.totalorder %s266, %s269
      %p278 = scmp.eq.s32.totalorder %s25, 1
      %p279 = por %p277, %p278
      %p280 = scmp.ne.s32.totalorder %s269, %s270
      %p281 = scmp.eq.s32.totalorder %s25, 0
      %p282 = por %p280, %p281
      %p283 = scmp.ne.s32.totalorder %s269, %s270
      %p284 = scmp.eq.s32.totalorder %s26, 1
      %p285 = por %p283, %p284
      %p287 = scmp.ne.s32.totalorder %s270, %s286
      %p288 = scmp.eq.s32.totalorder %s26, 0
      %p289 = por %p287, %p288
      %p290 = scmp.le.s32.totalorder 1, %s20
      %p291 = scmp.lt.s32.totalorder %s20, 3
      %p292 = pnand %p290, %p291
      %p293 = pneg %p292
      // Predicated region
      $region9: #{lenet_forward.1} parent=5 // pred_check
        _
      $region10: #{lenet_forward.1} parent=5 // pred_check_branch
        %295 = sbr.rel (%p292) target = $region12
      $region11: #{lenet_forward.1} parent=5 // pred_region
        %s296 = ssub.s32 %s20, 1
        // Predicated region
        $region13: #{lenet_forward.1} parent=11 // pred_check
          %p297 = pneg %p67
        $region14: #{lenet_forward.1} parent=11 // pred_check_branch
          %299 = sbr.rel (%p297) target = $region16
        $region15: #{lenet_forward.1} parent=11 // pred_region
          _
        $region16: #{lenet_forward.1} parent=11 // pred_fallthru
          _
        // Predicated region
        $region17: #{lenet_forward.1} parent=11 // pred_check
          %p300 = pneg %p88
        $region18: #{lenet_forward.1} parent=11 // pred_check_branch
          %302 = sbr.rel (%p300) target = $region20
        $region19: #{lenet_forward.1} parent=11 // pred_region
          _
        $region20: #{lenet_forward.1} parent=11 // pred_fallthru
          _
        // Predicated region
        $region21: #{lenet_forward.1} parent=11 // pred_check
          %p303 = pneg %p109
        $region22: #{lenet_forward.1} parent=11 // pred_check_branch
          %305 = sbr.rel (%p303) target = $region24
        $region23: #{lenet_forward.1} parent=11 // pred_region
          _
        $region24: #{lenet_forward.1} parent=11 // pred_fallthru
          _
        // Predicated region
        $region25: #{lenet_forward.1} parent=11 // pred_check
          %p306 = pneg %p130
        $region26: #{lenet_forward.1} parent=11 // pred_check_branch
          %308 = sbr.rel (%p306) target = $region28
        $region27: #{lenet_forward.1} parent=11 // pred_region
          _
        $region28: #{lenet_forward.1} parent=11 // pred_fallthru
          _
        // Predicated region
        $region29: #{lenet_forward.1} parent=11 // pred_check
          %p309 = pneg %p151
        $region30: #{lenet_forward.1} parent=11 // pred_check_branch
          %311 = sbr.rel (%p309) target = $region32
        $region31: #{lenet_forward.1} parent=11 // pred_region
          _
        $region32: #{lenet_forward.1} parent=11 // pred_fallthru
          _
        // Predicated region
        $region33: #{lenet_forward.1} parent=11 // pred_check
          %p312 = pneg %p172
        $region34: #{lenet_forward.1} parent=11 // pred_check_branch
          %314 = sbr.rel (%p312) target = $region36
        $region35: #{lenet_forward.1} parent=11 // pred_region
          _
        $region36: #{lenet_forward.1} parent=11 // pred_fallthru
          _
        // Predicated region
        $region37: #{lenet_forward.1} parent=11 // pred_check
          %p315 = pneg %p193
        $region38: #{lenet_forward.1} parent=11 // pred_check_branch
          %317 = sbr.rel (%p315) target = $region40
        $region39: #{lenet_forward.1} parent=11 // pred_region
          _
        $region40: #{lenet_forward.1} parent=11 // pred_fallthru
          _
        // Predicated region
        $region41: #{lenet_forward.1} parent=11 // pred_check
          %p318 = pneg %p214
        $region42: #{lenet_forward.1} parent=11 // pred_check_branch
          %320 = sbr.rel (%p318) target = $region44
        $region43: #{lenet_forward.1} parent=11 // pred_region
          _
        $region44: #{lenet_forward.1} parent=11 // pred_fallthru
          _
        // Predicated region
        $region45: #{lenet_forward.1} parent=11 // pred_check
          %p321 = pneg %p235
        $region46: #{lenet_forward.1} parent=11 // pred_check_branch
          %323 = sbr.rel (%p321) target = $region48
        $region47: #{lenet_forward.1} parent=11 // pred_region
          _
        $region48: #{lenet_forward.1} parent=11 // pred_fallthru
          _
        // Predicated region
        $region49: #{lenet_forward.1} parent=11 // pred_check
          %p324 = pneg %p256
        $region50: #{lenet_forward.1} parent=11 // pred_check_branch
          %326 = sbr.rel (%p324) target = $region52
        $region51: #{lenet_forward.1} parent=11 // pred_region
          _
        $region52: #{lenet_forward.1} parent=11 // pred_fallthru
          _
      $region12: #{lenet_forward.1} parent=5 // pred_fallthru
        _
      %p327 = scmp.lt.s32.totalorder %s20, 2
      // Predicated region
      $region53: #{lenet_forward.1} parent=5 // pred_check
        %p328 = pneg %p327
      $region54: #{lenet_forward.1} parent=5 // pred_check_branch
        %330 = sbr.rel (%p328) target = $region56
      $region55: #{lenet_forward.1} parent=5 // pred_region
        // Predicated region
        $region57: #{lenet_forward.1} parent=55 // pred_check
          %p331 = pneg %p40
        $region58: #{lenet_forward.1} parent=55 // pred_check_branch
          %333 = sbr.rel (%p331) target = $region60
        $region59: #{lenet_forward.1} parent=55 // pred_region
          %p334 = scmp.lt.s32.totalorder %s20, 1
          %s335 = scalar_select %p334, %s20, 1
          %s336 = smul.addr %s335, 4
          %s337 = smul.addr %s336, 8
          %s338 = scalar_lea.vmem %s0, %s337
        $region60: #{lenet_forward.1} parent=55 // pred_fallthru
          _
      $region56: #{lenet_forward.1} parent=5 // pred_fallthru
        _
      %p339 = scmp.le.s32.totalorder 1, %s20
      %p340 = scmp.lt.s32.totalorder %s20, 3
      %p341 = pnand %p339, %p340
      %p342 = pneg %p341
      // Predicated region
      $region61: #{lenet_forward.1} parent=5 // pred_check
        _
      $region62: #{lenet_forward.1} parent=5 // pred_check_branch
        %344 = sbr.rel (%p341) target = $region64
      $region63: #{lenet_forward.1} parent=5 // pred_region
        %s345 = ssub.s32 %s20, 1
        %p346 = scmp.lt.s32.totalorder %s25, 1
        %s347 = scalar_select %p346, %s25, 1
        %s348 = smul.addr %s347, 4
        %s349 = smul.addr %s348, 8
        %s350 = scalar_lea.vmem %s0, %s349
        %p351 = pneg %p46
        %p352 = pneg %p43
        %p353 = pneg %p67
        %p354 = pneg %p64
        %p355 = pneg %p88
        %p356 = pneg %p85
        %p357 = pneg %p109
        %p358 = pneg %p106
        %p359 = pneg %p130
        %p360 = pneg %p127
        %p361 = pneg %p151
        %p362 = pneg %p148
        %p363 = pneg %p172
        %p364 = pneg %p169
        %p365 = pneg %p193
        %p366 = pneg %p190
        %p367 = pneg %p214
        %p368 = pneg %p211
        %p369 = pneg %p235
        %p370 = pneg %p232
        %p371 = pneg %p256
        %p372 = pneg %p253
        %p373 = pneg %p282
        %p374 = pneg %p279
        %s375 = sand.u32 %s269, 1
        %s376 = scalar_lea.sflag [#allocation6], %s375
        %s377 = sand.u32 %s269, 1
        %s378 = scalar_lea.vmem [#allocation5], %s377
        %p379 = scmp.lt.s32.totalorder %s25, 1
        %s380 = scalar_select %p379, %s25, 1
        %s381 = smul.addr %s380, 4
        %s382 = smul.addr %s381, 8
        %s383 = scalar_lea.vmem %s0, %s382
        %v385 = vld [vmem:[%s383] sm:$0x7f]
        %v386 = vpack.c.bf16 %v385, %v385
        %v387 = vld [vmem:[%s1] sm:$0xff]
        %v388 = vld [vmem:[%s1 + $0x8] sm:$0xff]
        %v389 = vld [vmem:[%s1 + $0x10] sm:$0xff]
        %v390 = vld [vmem:[%s1 + $0x18] sm:$0xff]
        %s391 = scalar_lea.vmem %s383, 8
        %v392 = vld [vmem:[%s391] sm:$0x7f]
        %v393 = vpack.c.bf16 %v392, %v392
        %s394 = scalar_lea.vmem %s1, 32
        %v395 = vld [vmem:[%s394] sm:$0xff]
        %v396 = vld [vmem:[%s394 + $0x8] sm:$0xff]
        %v397 = vld [vmem:[%s394 + $0x10] sm:$0xff]
        %v398 = vld [vmem:[%s394 + $0x18] sm:$0xff]
        %v403 = vunpack.c.l.b16 %v395
        %v404 = vunpack.c.h.b16 %v395
        %v405 = vunpack.c.l.b16 %v396
        %v406 = vunpack.c.h.b16 %v396
        %v407 = vunpack.c.l.b16 %v397
        %v408 = vunpack.c.h.b16 %v397
        %v409 = vunpack.c.l.b16 %v398
        %v410 = vunpack.c.h.b16 %v398
        %v411 = vpack.c.b16 %v405, %v403
        %v412 = vpack.c.b16 %v406, %v404
        %v413 = vpack.c.b16 %v409, %v407
        %v414 = vpack.c.b16 %v410, %v408
        %vm419 = vcmask 261120
        %v421 = vsel %vm419, %v393, 0
        %423 = vmatpush.bf16.msra.mxu0 0
        %424 = vmatpush.bf16.msra.mxu0 0
        %425 = vmatpush.bf16.msra.mxu0 0
        %426 = vmatpush.bf16.msra.mxu0 0
        %427 = vmatpush.bf16.msra.mxu0 0
        %428 = vmatpush.bf16.msra.mxu0 0
        %429 = vmatpush.bf16.msra.mxu0 %v413
        %430 = vmatpush.bf16.msra.mxu0 %v411
        %431 = vmatmul.bf16.gmra.mxu0 %v421
        %v432 = vpop.f32.mrf.mxu0
        %v433 = vadd.f32 0.0, %v432
        %v434 = vpop.f32.mrf.mxu0
        %435 = vdwg.mxu0
        %436 = vmatpush.bf16.msra.mxu0 0
        %437 = vmatpush.bf16.msra.mxu0 0
        %438 = vmatpush.bf16.msra.mxu0 0
        %439 = vmatpush.bf16.msra.mxu0 0
        %440 = vmatpush.bf16.msra.mxu0 0
        %441 = vmatpush.bf16.msra.mxu0 0
        %442 = vmatpush.bf16.msra.mxu0 %v414
        %443 = vmatpush.bf16.msra.mxu0 %v412
        %444 = vmatmul.bf16.gmra.mxu0 %v421
        %v445 = vpop.f32.mrf.mxu0
        %v446 = vadd.f32 0.0, %v445
        %v447 = vpop.f32.mrf.mxu0
        %448 = vdwg.mxu0
        %v453 = vunpack.c.l.b16 %v387
        %v454 = vunpack.c.h.b16 %v387
        %v455 = vunpack.c.l.b16 %v388
        %v456 = vunpack.c.h.b16 %v388
        %v457 = vunpack.c.l.b16 %v389
        %v458 = vunpack.c.h.b16 %v389
        %v459 = vunpack.c.l.b16 %v390
        %v460 = vunpack.c.h.b16 %v390
        %v461 = vpack.c.b16 %v455, %v453
        %v462 = vpack.c.b16 %v456, %v454
        %v463 = vpack.c.b16 %v459, %v457
        %v464 = vpack.c.b16 %v460, %v458
        %v470 = vsel %vm419, %v386, 0
        %472 = vmatpush.bf16.msra.mxu0 0
        %473 = vmatpush.bf16.msra.mxu0 0
        %474 = vmatpush.bf16.msra.mxu0 0
        %475 = vmatpush.bf16.msra.mxu0 0
        %476 = vmatpush.bf16.msra.mxu0 0
        %477 = vmatpush.bf16.msra.mxu0 0
        %478 = vmatpush.bf16.msra.mxu0 %v463
        %479 = vmatpush.bf16.msra.mxu0 %v461
        %480 = vmatmul.bf16.gmra.mxu0 %v470
        %v481 = vpop.f32.mrf.mxu0
        %v482 = vadd.f32 %v433, %v481
        %v483 = vpop.f32.mrf.mxu0
        %484 = vdwg.mxu0
        %485 = vmatpush.bf16.msra.mxu0 0
        %486 = vmatpush.bf16.msra.mxu0 0
        %487 = vmatpush.bf16.msra.mxu0 0
        %488 = vmatpush.bf16.msra.mxu0 0
        %489 = vmatpush.bf16.msra.mxu0 0
        %490 = vmatpush.bf16.msra.mxu0 0
        %491 = vmatpush.bf16.msra.mxu0 %v464
        %492 = vmatpush.bf16.msra.mxu0 %v462
        %493 = vmatmul.bf16.gmra.mxu0 %v470
        %v494 = vpop.f32.mrf.mxu0
        %v495 = vadd.f32 %v446, %v494
        %v496 = vpop.f32.mrf.mxu0
        %497 = vdwg.mxu0
        %s498 = scalar_lea.vmem %s383, 16
        %v499 = vld [vmem:[%s498] sm:$0x7f]
        %v500 = vpack.c.bf16 %v499, %v499
        %s501 = scalar_lea.vmem %s1, 64
        %v502 = vld [vmem:[%s501] sm:$0xff]
        %v503 = vld [vmem:[%s501 + $0x8] sm:$0xff]
        %v504 = vld [vmem:[%s501 + $0x10] sm:$0xff]
        %v505 = vld [vmem:[%s501 + $0x18] sm:$0xff]
        %v510 = vunpack.c.l.b16 %v502
        %v511 = vunpack.c.h.b16 %v502
        %v512 = vunpack.c.l.b16 %v503
        %v513 = vunpack.c.h.b16 %v503
        %v514 = vunpack.c.l.b16 %v504
        %v515 = vunpack.c.h.b16 %v504
        %v516 = vunpack.c.l.b16 %v505
        %v517 = vunpack.c.h.b16 %v505
        %v518 = vpack.c.b16 %v512, %v510
        %v519 = vpack.c.b16 %v513, %v511
        %v520 = vpack.c.b16 %v516, %v514
        %v521 = vpack.c.b16 %v517, %v515
        %v527 = vsel %vm419, %v500, 0
        %529 = vmatpush.bf16.msra.mxu0 0
        %530 = vmatpush.bf16.msra.mxu0 0
        %531 = vmatpush.bf16.msra.mxu0 0
        %532 = vmatpush.bf16.msra.mxu0 0
        %533 = vmatpush.bf16.msra.mxu0 0
        %534 = vmatpush.bf16.msra.mxu0 0
        %535 = vmatpush.bf16.msra.mxu0 %v520
        %536 = vmatpush.bf16.msra.mxu0 %v518
        %537 = vmatmul.bf16.gmra.mxu0 %v527
        %v538 = vpop.f32.mrf.mxu0
        %v539 = vadd.f32 0.0, %v538
        %v540 = vpop.f32.mrf.mxu0
        %541 = vdwg.mxu0
        %542 = vmatpush.bf16.msra.mxu0 0
        %543 = vmatpush.bf16.msra.mxu0 0
        %544 = vmatpush.bf16.msra.mxu0 0
        %545 = vmatpush.bf16.msra.mxu0 0
        %546 = vmatpush.bf16.msra.mxu0 0
        %547 = vmatpush.bf16.msra.mxu0 0
        %548 = vmatpush.bf16.msra.mxu0 %v521
        %549 = vmatpush.bf16.msra.mxu0 %v519
        %550 = vmatmul.bf16.gmra.mxu0 %v527
        %v551 = vpop.f32.mrf.mxu0
        %v552 = vadd.f32 0.0, %v551
        %v553 = vpop.f32.mrf.mxu0
        %554 = vdwg.mxu0
        %v555 = vadd.f32 %v482, %v539
        %v556 = vadd.f32 %v495, %v552
        %s557 = scalar_lea.vmem %s383, 24
        %v558 = vld [vmem:[%s557] sm:$0x7f]
        %v559 = vpack.c.bf16 %v558, %v558
        %s560 = scalar_lea.vmem %s1, 96
        %v561 = vld [vmem:[%s560] sm:$0xff]
        %v562 = vld [vmem:[%s560 + $0x8] sm:$0xff]
        %v563 = vld [vmem:[%s560 + $0x10] sm:$0xff]
        %v564 = vld [vmem:[%s560 + $0x18] sm:$0xff]
        %v569 = vunpack.c.l.b16 %v561
        %v570 = vunpack.c.h.b16 %v561
        %v571 = vunpack.c.l.b16 %v562
        %v572 = vunpack.c.h.b16 %v562
        %v573 = vunpack.c.l.b16 %v563
        %v574 = vunpack.c.h.b16 %v563
        %v575 = vunpack.c.l.b16 %v564
        %v576 = vunpack.c.h.b16 %v564
        %v577 = vpack.c.b16 %v571, %v569
        %v578 = vpack.c.b16 %v572, %v570
        %v579 = vpack.c.b16 %v575, %v573
        %v580 = vpack.c.b16 %v576, %v574
        %v586 = vsel %vm419, %v559, 0
        %588 = vmatpush.bf16.msra.mxu0 0
        %589 = vmatpush.bf16.msra.mxu0 0
        %590 = vmatpush.bf16.msra.mxu0 0
        %591 = vmatpush.bf16.msra.mxu0 0
        %592 = vmatpush.bf16.msra.mxu0 0
        %593 = vmatpush.bf16.msra.mxu0 0
        %594 = vmatpush.bf16.msra.mxu0 %v579
        %595 = vmatpush.bf16.msra.mxu0 %v577
        %596 = vmatmul.bf16.gmra.mxu0 %v586
        %v597 = vpop.f32.mrf.mxu0
        %v598 = vadd.f32 0.0, %v597
        %v599 = vpop.f32.mrf.mxu0
        %600 = vdwg.mxu0
        %601 = vmatpush.bf16.msra.mxu0 0
        %602 = vmatpush.bf16.msra.mxu0 0
        %603 = vmatpush.bf16.msra.mxu0 0
        %604 = vmatpush.bf16.msra.mxu0 0
        %605 = vmatpush.bf16.msra.mxu0 0
        %606 = vmatpush.bf16.msra.mxu0 0
        %607 = vmatpush.bf16.msra.mxu0 %v580
        %608 = vmatpush.bf16.msra.mxu0 %v578
        %609 = vmatmul.bf16.gmra.mxu0 %v586
        %v610 = vpop.f32.mrf.mxu0
        %v611 = vadd.f32 0.0, %v610
        %v612 = vpop.f32.mrf.mxu0
        %613 = vdwg.mxu0
        %v614 = vadd.f32 %v555, %v598
        %v615 = vadd.f32 %v556, %v611
        %v616 = vld [vmem:[%s383 + $0x1] sm:$0x7f]
        %v617 = vpack.c.bf16 %v616, %v616
        %s618 = scalar_lea.vmem %s1, 128
        %v619 = vld [vmem:[%s618] sm:$0xff]
        %v620 = vld [vmem:[%s618 + $0x8] sm:$0xff]
        %v621 = vld [vmem:[%s618 + $0x10] sm:$0xff]
        %v622 = vld [vmem:[%s618 + $0x18] sm:$0xff]
        %v627 = vunpack.c.l.b16 %v619
        %v628 = vunpack.c.h.b16 %v619
        %v629 = vunpack.c.l.b16 %v620
        %v630 = vunpack.c.h.b16 %v620
        %v631 = vunpack.c.l.b16 %v621
        %v632 = vunpack.c.h.b16 %v621
        %v633 = vunpack.c.l.b16 %v622
        %v634 = vunpack.c.h.b16 %v622
        %v635 = vpack.c.b16 %v629, %v627
        %v636 = vpack.c.b16 %v630, %v628
        %v637 = vpack.c.b16 %v633, %v631
        %v638 = vpack.c.b16 %v634, %v632
        %v644 = vsel %vm419, %v617, 0
        %646 = vmatpush.bf16.msra.mxu0 0
        %647 = vmatpush.bf16.msra.mxu0 0
        %648 = vmatpush.bf16.msra.mxu0 0
        %649 = vmatpush.bf16.msra.mxu0 0
        %650 = vmatpush.bf16.msra.mxu0 0
        %651 = vmatpush.bf16.msra.mxu0 0
        %652 = vmatpush.bf16.msra.mxu0 %v637
        %653 = vmatpush.bf16.msra.mxu0 %v635
        %654 = vmatmul.bf16.gmra.mxu0 %v644
        %v655 = vpop.f32.mrf.mxu0
        %v656 = vadd.f32 0.0, %v655
        %v657 = vpop.f32.mrf.mxu0
        %658 = vdwg.mxu0
        %659 = vmatpush.bf16.msra.mxu0 0
        %660 = vmatpush.bf16.msra.mxu0 0
        %661 = vmatpush.bf16.msra.mxu0 0
        %662 = vmatpush.bf16.msra.mxu0 0
        %663 = vmatpush.bf16.msra.mxu0 0
        %664 = vmatpush.bf16.msra.mxu0 0
        %665 = vmatpush.bf16.msra.mxu0 %v638
        %666 = vmatpush.bf16.msra.mxu0 %v636
        %667 = vmatmul.bf16.gmra.mxu0 %v644
        %v668 = vpop.f32.mrf.mxu0
        %v669 = vadd.f32 0.0, %v668
        %v670 = vpop.f32.mrf.mxu0
        %671 = vdwg.mxu0
        %v672 = vadd.f32 %v614, %v656
        %v673 = vadd.f32 %v615, %v669
        %674 = vmatpush.bf16.msra.mxu0 0
        %675 = vmatpush.bf16.msra.mxu0 0
        %676 = vmatpush.bf16.msra.mxu0 0
        %677 = vmatpush.bf16.msra.mxu0 0
        %678 = vmatpush.bf16.msra.mxu0 0
        %679 = vmatpush.bf16.msra.mxu0 0
        %680 = vmatpush.bf16.msra.mxu0 %v413
        %681 = vmatpush.bf16.msra.mxu0 %v411
        %682 = vmatmul.bf16.gmra.mxu0 %v527
        %v683 = vpop.f32.mrf.mxu0
        %v684 = vadd.f32 0.0, %v683
        %v685 = vpop.f32.mrf.mxu0
        %686 = vdwg.mxu0
        %687 = vmatpush.bf16.msra.mxu0 0
        %688 = vmatpush.bf16.msra.mxu0 0
        %689 = vmatpush.bf16.msra.mxu0 0
        %690 = vmatpush.bf16.msra.mxu0 0
        %691 = vmatpush.bf16.msra.mxu0 0
        %692 = vmatpush.bf16.msra.mxu0 0
        %693 = vmatpush.bf16.msra.mxu0 %v414
        %694 = vmatpush.bf16.msra.mxu0 %v412
        %695 = vmatmul.bf16.gmra.mxu0 %v527
        %v696 = vpop.f32.mrf.mxu0
        %v697 = vadd.f32 0.0, %v696
        %v698 = vpop.f32.mrf.mxu0
        %699 = vdwg.mxu0
        %700 = vmatpush.bf16.msra.mxu0 0
        %701 = vmatpush.bf16.msra.mxu0 0
        %702 = vmatpush.bf16.msra.mxu0 0
        %703 = vmatpush.bf16.msra.mxu0 0
        %704 = vmatpush.bf16.msra.mxu0 0
        %705 = vmatpush.bf16.msra.mxu0 0
        %706 = vmatpush.bf16.msra.mxu0 %v463
        %707 = vmatpush.bf16.msra.mxu0 %v461
        %708 = vmatmul.bf16.gmra.mxu0 %v421
        %v709 = vpop.f32.mrf.mxu0
        %v710 = vadd.f32 %v684, %v709
        %v711 = vpop.f32.mrf.mxu0
        %712 = vdwg.mxu0
        %713 = vmatpush.bf16.msra.mxu0 0
        %714 = vmatpush.bf16.msra.mxu0 0
        %715 = vmatpush.bf16.msra.mxu0 0
        %716 = vmatpush.bf16.msra.mxu0 0
        %717 = vmatpush.bf16.msra.mxu0 0
        %718 = vmatpush.bf16.msra.mxu0 0
        %719 = vmatpush.bf16.msra.mxu0 %v464
        %720 = vmatpush.bf16.msra.mxu0 %v462
        %721 = vmatmul.bf16.gmra.mxu0 %v421
        %v722 = vpop.f32.mrf.mxu0
        %v723 = vadd.f32 %v697, %v722
        %v724 = vpop.f32.mrf.mxu0
        %725 = vdwg.mxu0
        %726 = vmatpush.bf16.msra.mxu0 0
        %727 = vmatpush.bf16.msra.mxu0 0
        %728 = vmatpush.bf16.msra.mxu0 0
        %729 = vmatpush.bf16.msra.mxu0 0
        %730 = vmatpush.bf16.msra.mxu0 0
        %731 = vmatpush.bf16.msra.mxu0 0
        %732 = vmatpush.bf16.msra.mxu0 %v520
        %733 = vmatpush.bf16.msra.mxu0 %v518
        %734 = vmatmul.bf16.gmra.mxu0 %v586
        %v735 = vpop.f32.mrf.mxu0
        %v736 = vadd.f32 0.0, %v735
        %v737 = vpop.f32.mrf.mxu0
        %738 = vdwg.mxu0
        %739 = vmatpush.bf16.msra.mxu0 0
        %740 = vmatpush.bf16.msra.mxu0 0
        %741 = vmatpush.bf16.msra.mxu0 0
        %742 = vmatpush.bf16.msra.mxu0 0
        %743 = vmatpush.bf16.msra.mxu0 0
        %744 = vmatpush.bf16.msra.mxu0 0
        %745 = vmatpush.bf16.msra.mxu0 %v521
        %746 = vmatpush.bf16.msra.mxu0 %v519
        %747 = vmatmul.bf16.gmra.mxu0 %v586
        %v748 = vpop.f32.mrf.mxu0
        %v749 = vadd.f32 0.0, %v748
        %v750 = vpop.f32.mrf.mxu0
        %751 = vdwg.mxu0
        %v752 = vadd.f32 %v710, %v736
        %v753 = vadd.f32 %v723, %v749
        %754 = vmatpush.bf16.msra.mxu0 0
        %755 = vmatpush.bf16.msra.mxu0 0
        %756 = vmatpush.bf16.msra.mxu0 0
        %757 = vmatpush.bf16.msra.mxu0 0
        %758 = vmatpush.bf16.msra.mxu0 0
        %759 = vmatpush.bf16.msra.mxu0 0
        %760 = vmatpush.bf16.msra.mxu0 %v579
        %761 = vmatpush.bf16.msra.mxu0 %v577
        %762 = vmatmul.bf16.gmra.mxu0 %v644
        %v763 = vpop.f32.mrf.mxu0
        %v764 = vadd.f32 0.0, %v763
        %v765 = vpop.f32.mrf.mxu0
        %766 = vdwg.mxu0
        %767 = vmatpush.bf16.msra.mxu0 0
        %768 = vmatpush.bf16.msra.mxu0 0
        %769 = vmatpush.bf16.msra.mxu0 0
        %770 = vmatpush.bf16.msra.mxu0 0
        %771 = vmatpush.bf16.msra.mxu0 0
        %772 = vmatpush.bf16.msra.mxu0 0
        %773 = vmatpush.bf16.msra.mxu0 %v580
        %774 = vmatpush.bf16.msra.mxu0 %v578
        %775 = vmatmul.bf16.gmra.mxu0 %v644
        %v776 = vpop.f32.mrf.mxu0
        %v777 = vadd.f32 0.0, %v776
        %v778 = vpop.f32.mrf.mxu0
        %779 = vdwg.mxu0
        %v780 = vadd.f32 %v752, %v764
        %v781 = vadd.f32 %v753, %v777
        %v782 = vld [vmem:[%s391 + $0x1] sm:$0x7f]
        %v783 = vpack.c.bf16 %v782, %v782
        %v785 = vsel %vm419, %v783, 0
        %787 = vmatpush.bf16.msra.mxu0 0
        %788 = vmatpush.bf16.msra.mxu0 0
        %789 = vmatpush.bf16.msra.mxu0 0
        %790 = vmatpush.bf16.msra.mxu0 0
        %791 = vmatpush.bf16.msra.mxu0 0
        %792 = vmatpush.bf16.msra.mxu0 0
        %793 = vmatpush.bf16.msra.mxu0 %v637
        %794 = vmatpush.bf16.msra.mxu0 %v635
        %795 = vmatmul.bf16.gmra.mxu0 %v785
        %v796 = vpop.f32.mrf.mxu0
        %v797 = vadd.f32 0.0, %v796
        %v798 = vpop.f32.mrf.mxu0
        %799 = vdwg.mxu0
        %800 = vmatpush.bf16.msra.mxu0 0
        %801 = vmatpush.bf16.msra.mxu0 0
        %802 = vmatpush.bf16.msra.mxu0 0
        %803 = vmatpush.bf16.msra.mxu0 0
        %804 = vmatpush.bf16.msra.mxu0 0
        %805 = vmatpush.bf16.msra.mxu0 0
        %806 = vmatpush.bf16.msra.mxu0 %v638
        %807 = vmatpush.bf16.msra.mxu0 %v636
        %808 = vmatmul.bf16.gmra.mxu0 %v785
        %v809 = vpop.f32.mrf.mxu0
        %v810 = vadd.f32 0.0, %v809
        %v811 = vpop.f32.mrf.mxu0
        %812 = vdwg.mxu0
        %v813 = vadd.f32 %v780, %v797
        %v814 = vadd.f32 %v781, %v810
        %815 = vmatpush.bf16.msra.mxu0 0
        %816 = vmatpush.bf16.msra.mxu0 0
        %817 = vmatpush.bf16.msra.mxu0 0
        %818 = vmatpush.bf16.msra.mxu0 0
        %819 = vmatpush.bf16.msra.mxu0 0
        %820 = vmatpush.bf16.msra.mxu0 0
        %821 = vmatpush.bf16.msra.mxu0 %v413
        %822 = vmatpush.bf16.msra.mxu0 %v411
        %823 = vmatmul.bf16.gmra.mxu0 %v586
        %v824 = vpop.f32.mrf.mxu0
        %v825 = vadd.f32 0.0, %v824
        %v826 = vpop.f32.mrf.mxu0
        %827 = vdwg.mxu0
        %828 = vmatpush.bf16.msra.mxu0 0
        %829 = vmatpush.bf16.msra.mxu0 0
        %830 = vmatpush.bf16.msra.mxu0 0
        %831 = vmatpush.bf16.msra.mxu0 0
        %832 = vmatpush.bf16.msra.mxu0 0
        %833 = vmatpush.bf16.msra.mxu0 0
        %834 = vmatpush.bf16.msra.mxu0 %v414
        %835 = vmatpush.bf16.msra.mxu0 %v412
        %836 = vmatmul.bf16.gmra.mxu0 %v586
        %v837 = vpop.f32.mrf.mxu0
        %v838 = vadd.f32 0.0, %v837
        %v839 = vpop.f32.mrf.mxu0
        %840 = vdwg.mxu0
        %841 = vmatpush.bf16.msra.mxu0 0
        %842 = vmatpush.bf16.msra.mxu0 0
        %843 = vmatpush.bf16.msra.mxu0 0
        %844 = vmatpush.bf16.msra.mxu0 0
        %845 = vmatpush.bf16.msra.mxu0 0
        %846 = vmatpush.bf16.msra.mxu0 0
        %847 = vmatpush.bf16.msra.mxu0 %v463
        %848 = vmatpush.bf16.msra.mxu0 %v461
        %849 = vmatmul.bf16.gmra.mxu0 %v527
        %v850 = vpop.f32.mrf.mxu0
        %v851 = vadd.f32 %v825, %v850
        %v852 = vpop.f32.mrf.mxu0
        %853 = vdwg.mxu0
        %854 = vmatpush.bf16.msra.mxu0 0
        %855 = vmatpush.bf16.msra.mxu0 0
        %856 = vmatpush.bf16.msra.mxu0 0
        %857 = vmatpush.bf16.msra.mxu0 0
        %858 = vmatpush.bf16.msra.mxu0 0
        %859 = vmatpush.bf16.msra.mxu0 0
        %860 = vmatpush.bf16.msra.mxu0 %v464
        %861 = vmatpush.bf16.msra.mxu0 %v462
        %862 = vmatmul.bf16.gmra.mxu0 %v527
        %v863 = vpop.f32.mrf.mxu0
        %v864 = vadd.f32 %v838, %v863
        %v865 = vpop.f32.mrf.mxu0
        %866 = vdwg.mxu0
        %867 = vmatpush.bf16.msra.mxu0 0
        %868 = vmatpush.bf16.msra.mxu0 0
        %869 = vmatpush.bf16.msra.mxu0 0
        %870 = vmatpush.bf16.msra.mxu0 0
        %871 = vmatpush.bf16.msra.mxu0 0
        %872 = vmatpush.bf16.msra.mxu0 0
        %873 = vmatpush.bf16.msra.mxu0 %v520
        %874 = vmatpush.bf16.msra.mxu0 %v518
        %875 = vmatmul.bf16.gmra.mxu0 %v644
        %v876 = vpop.f32.mrf.mxu0
        %v877 = vadd.f32 0.0, %v876
        %v878 = vpop.f32.mrf.mxu0
        %879 = vdwg.mxu0
        %880 = vmatpush.bf16.msra.mxu0 0
        %881 = vmatpush.bf16.msra.mxu0 0
        %882 = vmatpush.bf16.msra.mxu0 0
        %883 = vmatpush.bf16.msra.mxu0 0
        %884 = vmatpush.bf16.msra.mxu0 0
        %885 = vmatpush.bf16.msra.mxu0 0
        %886 = vmatpush.bf16.msra.mxu0 %v521
        %887 = vmatpush.bf16.msra.mxu0 %v519
        %888 = vmatmul.bf16.gmra.mxu0 %v644
        %v889 = vpop.f32.mrf.mxu0
        %v890 = vadd.f32 0.0, %v889
        %v891 = vpop.f32.mrf.mxu0
        %892 = vdwg.mxu0
        %v893 = vadd.f32 %v851, %v877
        %v894 = vadd.f32 %v864, %v890
        %895 = vmatpush.bf16.msra.mxu0 0
        %896 = vmatpush.bf16.msra.mxu0 0
        %897 = vmatpush.bf16.msra.mxu0 0
        %898 = vmatpush.bf16.msra.mxu0 0
        %899 = vmatpush.bf16.msra.mxu0 0
        %900 = vmatpush.bf16.msra.mxu0 0
        %901 = vmatpush.bf16.msra.mxu0 %v579
        %902 = vmatpush.bf16.msra.mxu0 %v577
        %903 = vmatmul.bf16.gmra.mxu0 %v785
        %v904 = vpop.f32.mrf.mxu0
        %v905 = vadd.f32 0.0, %v904
        %v906 = vpop.f32.mrf.mxu0
        %907 = vdwg.mxu0
        %908 = vmatpush.bf16.msra.mxu0 0
        %909 = vmatpush.bf16.msra.mxu0 0
        %910 = vmatpush.bf16.msra.mxu0 0
        %911 = vmatpush.bf16.msra.mxu0 0
        %912 = vmatpush.bf16.msra.mxu0 0
        %913 = vmatpush.bf16.msra.mxu0 0
        %914 = vmatpush.bf16.msra.mxu0 %v580
        %915 = vmatpush.bf16.msra.mxu0 %v578
        %916 = vmatmul.bf16.gmra.mxu0 %v785
        %v917 = vpop.f32.mrf.mxu0
        %v918 = vadd.f32 0.0, %v917
        %v919 = vpop.f32.mrf.mxu0
        %920 = vdwg.mxu0
        %v921 = vadd.f32 %v893, %v905
        %v922 = vadd.f32 %v894, %v918
        %v923 = vld [vmem:[%s498 + $0x1] sm:$0x7f]
        %v924 = vpack.c.bf16 %v923, %v923
        %v926 = vsel %vm419, %v924, 0
        %928 = vmatpush.bf16.msra.mxu0 0
        %929 = vmatpush.bf16.msra.mxu0 0
        %930 = vmatpush.bf16.msra.mxu0 0
        %931 = vmatpush.bf16.msra.mxu0 0
        %932 = vmatpush.bf16.msra.mxu0 0
        %933 = vmatpush.bf16.msra.mxu0 0
        %934 = vmatpush.bf16.msra.mxu0 %v637
        %935 = vmatpush.bf16.msra.mxu0 %v635
        %936 = vmatmul.bf16.gmra.mxu0 %v926
        %v937 = vpop.f32.mrf.mxu0
        %v938 = vadd.f32 0.0, %v937
        %v939 = vpop.f32.mrf.mxu0
        %940 = vdwg.mxu0
        %941 = vmatpush.bf16.msra.mxu0 0
        %942 = vmatpush.bf16.msra.mxu0 0
        %943 = vmatpush.bf16.msra.mxu0 0
        %944 = vmatpush.bf16.msra.mxu0 0
        %945 = vmatpush.bf16.msra.mxu0 0
        %946 = vmatpush.bf16.msra.mxu0 0
        %947 = vmatpush.bf16.msra.mxu0 %v638
        %948 = vmatpush.bf16.msra.mxu0 %v636
        %949 = vmatmul.bf16.gmra.mxu0 %v926
        %v950 = vpop.f32.mrf.mxu0
        %v951 = vadd.f32 0.0, %v950
        %v952 = vpop.f32.mrf.mxu0
        %953 = vdwg.mxu0
        %v954 = vadd.f32 %v921, %v938
        %v955 = vadd.f32 %v922, %v951
        %956 = vmatpush.bf16.msra.mxu0 0
        %957 = vmatpush.bf16.msra.mxu0 0
        %958 = vmatpush.bf16.msra.mxu0 0
        %959 = vmatpush.bf16.msra.mxu0 0
        %960 = vmatpush.bf16.msra.mxu0 0
        %961 = vmatpush.bf16.msra.mxu0 0
        %962 = vmatpush.bf16.msra.mxu0 %v413
        %963 = vmatpush.bf16.msra.mxu0 %v411
        %964 = vmatmul.bf16.gmra.mxu0 %v644
        %v965 = vpop.f32.mrf.mxu0
        %v966 = vadd.f32 0.0, %v965
        %v967 = vpop.f32.mrf.mxu0
        %968 = vdwg.mxu0
        %969 = vmatpush.bf16.msra.mxu0 0
        %970 = vmatpush.bf16.msra.mxu0 0
        %971 = vmatpush.bf16.msra.mxu0 0
        %972 = vmatpush.bf16.msra.mxu0 0
        %973 = vmatpush.bf16.msra.mxu0 0
        %974 = vmatpush.bf16.msra.mxu0 0
        %975 = vmatpush.bf16.msra.mxu0 %v414
        %976 = vmatpush.bf16.msra.mxu0 %v412
        %977 = vmatmul.bf16.gmra.mxu0 %v644
        %v978 = vpop.f32.mrf.mxu0
        %v979 = vadd.f32 0.0, %v978
        %v980 = vpop.f32.mrf.mxu0
        %981 = vdwg.mxu0
        %982 = vmatpush.bf16.msra.mxu0 0
        %983 = vmatpush.bf16.msra.mxu0 0
        %984 = vmatpush.bf16.msra.mxu0 0
        %985 = vmatpush.bf16.msra.mxu0 0
        %986 = vmatpush.bf16.msra.mxu0 0
        %987 = vmatpush.bf16.msra.mxu0 0
        %988 = vmatpush.bf16.msra.mxu0 %v463
        %989 = vmatpush.bf16.msra.mxu0 %v461
        %990 = vmatmul.bf16.gmra.mxu0 %v586
        %v991 = vpop.f32.mrf.mxu0
        %v992 = vadd.f32 %v966, %v991
        %v993 = vpop.f32.mrf.mxu0
        %994 = vdwg.mxu0
        %995 = vmatpush.bf16.msra.mxu0 0
        %996 = vmatpush.bf16.msra.mxu0 0
        %997 = vmatpush.bf16.msra.mxu0 0
        %998 = vmatpush.bf16.msra.mxu0 0
        %999 = vmatpush.bf16.msra.mxu0 0
        %1000 = vmatpush.bf16.msra.mxu0 0
        %1001 = vmatpush.bf16.msra.mxu0 %v464
        %1002 = vmatpush.bf16.msra.mxu0 %v462
        %1003 = vmatmul.bf16.gmra.mxu0 %v586
        %v1004 = vpop.f32.mrf.mxu0
        %v1005 = vadd.f32 %v979, %v1004
        %v1006 = vpop.f32.mrf.mxu0
        %1007 = vdwg.mxu0
        %1008 = vmatpush.bf16.msra.mxu0 0
        %1009 = vmatpush.bf16.msra.mxu0 0
        %1010 = vmatpush.bf16.msra.mxu0 0
        %1011 = vmatpush.bf16.msra.mxu0 0
        %1012 = vmatpush.bf16.msra.mxu0 0
        %1013 = vmatpush.bf16.msra.mxu0 0
        %1014 = vmatpush.bf16.msra.mxu0 %v520
        %1015 = vmatpush.bf16.msra.mxu0 %v518
        %1016 = vmatmul.bf16.gmra.mxu0 %v785
        %v1017 = vpop.f32.mrf.mxu0
        %v1018 = vadd.f32 0.0, %v1017
        %v1019 = vpop.f32.mrf.mxu0
        %1020 = vdwg.mxu0
        %1021 = vmatpush.bf16.msra.mxu0 0
        %1022 = vmatpush.bf16.msra.mxu0 0
        %1023 = vmatpush.bf16.msra.mxu0 0
        %1024 = vmatpush.bf16.msra.mxu0 0
        %1025 = vmatpush.bf16.msra.mxu0 0
        %1026 = vmatpush.bf16.msra.mxu0 0
        %1027 = vmatpush.bf16.msra.mxu0 %v521
        %1028 = vmatpush.bf16.msra.mxu0 %v519
        %1029 = vmatmul.bf16.gmra.mxu0 %v785
        %v1030 = vpop.f32.mrf.mxu0
        %v1031 = vadd.f32 0.0, %v1030
        %v1032 = vpop.f32.mrf.mxu0
        %1033 = vdwg.mxu0
        %v1034 = vadd.f32 %v992, %v1018
        %v1035 = vadd.f32 %v1005, %v1031
        %1036 = vmatpush.bf16.msra.mxu0 0
        %1037 = vmatpush.bf16.msra.mxu0 0
        %1038 = vmatpush.bf16.msra.mxu0 0
        %1039 = vmatpush.bf16.msra.mxu0 0
        %1040 = vmatpush.bf16.msra.mxu0 0
        %1041 = vmatpush.bf16.msra.mxu0 0
        %1042 = vmatpush.bf16.msra.mxu0 %v579
        %1043 = vmatpush.bf16.msra.mxu0 %v577
        %1044 = vmatmul.bf16.gmra.mxu0 %v926
        %v1045 = vpop.f32.mrf.mxu0
        %v1046 = vadd.f32 0.0, %v1045
        %v1047 = vpop.f32.mrf.mxu0
        %1048 = vdwg.mxu0
        %1049 = vmatpush.bf16.msra.mxu0 0
        %1050 = vmatpush.bf16.msra.mxu0 0
        %1051 = vmatpush.bf16.msra.mxu0 0
        %1052 = vmatpush.bf16.msra.mxu0 0
        %1053 = vmatpush.bf16.msra.mxu0 0
        %1054 = vmatpush.bf16.msra.mxu0 0
        %1055 = vmatpush.bf16.msra.mxu0 %v580
        %1056 = vmatpush.bf16.msra.mxu0 %v578
        %1057 = vmatmul.bf16.gmra.mxu0 %v926
        %v1058 = vpop.f32.mrf.mxu0
        %v1059 = vadd.f32 0.0, %v1058
        %v1060 = vpop.f32.mrf.mxu0
        %1061 = vdwg.mxu0
        %v1062 = vadd.f32 %v1034, %v1046
        %v1063 = vadd.f32 %v1035, %v1059
        %v1064 = vld [vmem:[%s557 + $0x1] sm:$0x7f]
        %v1065 = vpack.c.bf16 %v1064, %v1064
        %v1067 = vsel %vm419, %v1065, 0
        %1069 = vmatpush.bf16.msra.mxu0 0
        %1070 = vmatpush.bf16.msra.mxu0 0
        %1071 = vmatpush.bf16.msra.mxu0 0
        %1072 = vmatpush.bf16.msra.mxu0 0
        %1073 = vmatpush.bf16.msra.mxu0 0
        %1074 = vmatpush.bf16.msra.mxu0 0
        %1075 = vmatpush.bf16.msra.mxu0 %v637
        %1076 = vmatpush.bf16.msra.mxu0 %v635
        %1077 = vmatmul.bf16.gmra.mxu0 %v1067
        %v1078 = vpop.f32.mrf.mxu0
        %v1079 = vadd.f32 0.0, %v1078
        %v1080 = vpop.f32.mrf.mxu0
        %1081 = vdwg.mxu0
        %1082 = vmatpush.bf16.msra.mxu0 0
        %1083 = vmatpush.bf16.msra.mxu0 0
        %1084 = vmatpush.bf16.msra.mxu0 0
        %1085 = vmatpush.bf16.msra.mxu0 0
        %1086 = vmatpush.bf16.msra.mxu0 0
        %1087 = vmatpush.bf16.msra.mxu0 0
        %1088 = vmatpush.bf16.msra.mxu0 %v638
        %1089 = vmatpush.bf16.msra.mxu0 %v636
        %1090 = vmatmul.bf16.gmra.mxu0 %v1067
        %v1091 = vpop.f32.mrf.mxu0
        %v1092 = vadd.f32 0.0, %v1091
        %v1093 = vpop.f32.mrf.mxu0
        %1094 = vdwg.mxu0
        %v1095 = vadd.f32 %v1062, %v1079
        %v1096 = vadd.f32 %v1063, %v1092
        %v1097 = vmax.f32 %v672, %v813
        %v1098 = vmax.f32 %v673, %v814
        %1101 = vrot.lane.b32.xlu0 %v1097, 44
        %v1102 = vpop.permute.xlu0 %1101
        %1103 = vrot.lane.b32.xlu0 %v1098, 44
        %v1104 = vpop.permute.xlu0 %1103
        %vm1105 = vcmask 359424
        %v1106 = vsel %vm1105, %v1102, %v1104
        %v1108 = vmax.f32 %v1097, %v1106
        %v1109 = vld [vmem:[%s2] sm:$0x1]
        %v1111 = vperm.slane %v1109, 0
        %v1113 = vadd.f32 %v1108, %v1111
        %v1114 = vmax.f32 %v1113, 0.0
        %vm1115 = vcmask 686080
        %1116 = vst.msk [vmem:[#allocation2] sm:$0x7f] %vm1115, %v1114
        %v1117 = vmax.f32 %v954, %v1095
        %v1118 = vmax.f32 %v955, %v1096
        %1121 = vrot.lane.b32.xlu0 %v1117, 44
        %v1122 = vpop.permute.xlu0 %1121
        %1123 = vrot.lane.b32.xlu0 %v1118, 44
        %v1124 = vpop.permute.xlu0 %1123
        %v1125 = vsel %vm1105, %v1122, %v1124
        %v1127 = vmax.f32 %v1117, %v1125
        %v1128 = vld [vmem:[%s2] sm:$0x1]
        %v1130 = vperm.slane %v1128, 0
        %v1132 = vadd.f32 %v1127, %v1130
        %v1133 = vmax.f32 %v1132, 0.0
        %1134 = vst.msk [vmem:[#allocation3] sm:$0x7f] %vm1115, %v1133
        %v1135 = vld [vmem:[#allocation2] sm:$0x1f]
        %v1136 = vpack.c.bf16 %v1135, %v1135
        %v1137 = vld [vmem:[%s3] sm:$0xff]
        %v1138 = vld [vmem:[%s3 + $0x8] sm:$0xff]
        %v1139 = vld [vmem:[%s3 + $0x10] sm:$0xff]
        %v1140 = vld [vmem:[%s3 + $0x18] sm:$0xff]
        %v1141 = vld [vmem:[%s3 + $0x20] sm:$0xff]
        %v1142 = vld [vmem:[%s3 + $0x28] sm:$0xff]
        %v1143 = vld [vmem:[%s3 + $0x30] sm:$0xff]
        %v1144 = vld [vmem:[%s3 + $0x38] sm:$0xff]
        %v1145 = vld [vmem:[%s3 + $0x40] sm:$0xff]
        %v1146 = vld [vmem:[%s3 + $0x48] sm:$0xff]
        %v1147 = vld [vmem:[%s3 + $0x50] sm:$0x33]
        %v1148 = vld [vmem:[#allocation3] sm:$0x1f]
        %v1149 = vpack.c.bf16 %v1148, %v1148
        %s1150 = scalar_lea.vmem %s3, 88
        %v1151 = vld [vmem:[%s1150] sm:$0xff]
        %v1152 = vld [vmem:[%s1150 + $0x8] sm:$0xff]
        %v1153 = vld [vmem:[%s1150 + $0x10] sm:$0xff]
        %v1154 = vld [vmem:[%s1150 + $0x18] sm:$0xff]
        %v1155 = vld [vmem:[%s1150 + $0x20] sm:$0xff]
        %v1156 = vld [vmem:[%s1150 + $0x28] sm:$0xff]
        %v1157 = vld [vmem:[%s1150 + $0x30] sm:$0xff]
        %v1158 = vld [vmem:[%s1150 + $0x38] sm:$0xff]
        %v1159 = vld [vmem:[%s1150 + $0x40] sm:$0xff]
        %v1160 = vld [vmem:[%s1150 + $0x48] sm:$0xff]
        %v1161 = vld [vmem:[%s1150 + $0x50] sm:$0x33]
        %v1173 = vunpack.c.l.b16 %v1151
        %v1174 = vunpack.c.h.b16 %v1151
        %v1175 = vunpack.c.l.b16 %v1152
        %v1176 = vunpack.c.h.b16 %v1152
        %v1177 = vunpack.c.l.b16 %v1153
        %v1178 = vunpack.c.h.b16 %v1153
        %v1179 = vunpack.c.l.b16 %v1154
        %v1180 = vunpack.c.h.b16 %v1154
        %v1181 = vunpack.c.l.b16 %v1155
        %v1182 = vunpack.c.h.b16 %v1155
        %v1183 = vunpack.c.l.b16 %v1156
        %v1184 = vunpack.c.h.b16 %v1156
        %v1185 = vunpack.c.l.b16 %v1157
        %v1186 = vunpack.c.h.b16 %v1157
        %v1187 = vunpack.c.l.b16 %v1158
        %v1188 = vunpack.c.h.b16 %v1158
        %v1189 = vunpack.c.l.b16 %v1159
        %v1190 = vunpack.c.h.b16 %v1159
        %v1191 = vunpack.c.l.b16 %v1160
        %v1192 = vunpack.c.h.b16 %v1160
        %v1193 = vunpack.c.l.b16 %v1161
        %v1194 = vunpack.c.h.b16 %v1161
        %v1195 = vpack.c.b16 %v1175, %v1173
        %v1196 = vpack.c.b16 %v1176, %v1174
        %v1197 = vpack.c.b16 %v1179, %v1177
        %v1198 = vpack.c.b16 %v1180, %v1178
        %v1199 = vpack.c.b16 %v1183, %v1181
        %v1200 = vpack.c.b16 %v1184, %v1182
        %v1201 = vpack.c.b16 %v1187, %v1185
        %v1202 = vpack.c.b16 %v1188, %v1186
        %v1203 = vpack.c.b16 %v1191, %v1189
        %v1204 = vpack.c.b16 %v1192, %v1190
        %v1205 = vpack.c.b16 %v1193, %v1193
        %v1206 = vpack.c.b16 %v1194, %v1194
        %vm1217 = vcmask 687104
        %v1219 = vsel %vm1217, %v1149, 0
        %vm1221 = vcmask 1041408
        %v1223 = vsel %vm1221, %v1205, 0
        %v1226 = vsel %vm1221, %v1206, 0
        %1228 = vmatpush.bf16.msra.mxu0 0
        %1229 = vmatpush.bf16.msra.mxu0 0
        %1230 = vmatpush.bf16.msra.mxu0 %v1223
        %1231 = vmatpush.bf16.msra.mxu0 %v1203
        %1232 = vmatpush.bf16.msra.mxu0 %v1201
        %1233 = vmatpush.bf16.msra.mxu0 %v1199
        %1234 = vmatpush.bf16.msra.mxu0 %v1197
        %1235 = vmatpush.bf16.msra.mxu0 %v1195
        %1236 = vmatmul.bf16.gmra.mxu0 %v1219
        %v1237 = vpop.f32.mrf.mxu0
        %v1238 = vadd.f32 0.0, %v1237
        %v1239 = vpop.f32.mrf.mxu0
        %1240 = vdwg.mxu0
        %1241 = vmatpush.bf16.msra.mxu0 0
        %1242 = vmatpush.bf16.msra.mxu0 0
        %1243 = vmatpush.bf16.msra.mxu0 %v1226
        %1244 = vmatpush.bf16.msra.mxu0 %v1204
        %1245 = vmatpush.bf16.msra.mxu0 %v1202
        %1246 = vmatpush.bf16.msra.mxu0 %v1200
        %1247 = vmatpush.bf16.msra.mxu0 %v1198
        %1248 = vmatpush.bf16.msra.mxu0 %v1196
        %1249 = vmatmul.bf16.gmra.mxu0 %v1219
        %v1250 = vpop.f32.mrf.mxu0
        %v1251 = vadd.f32 0.0, %v1250
        %v1252 = vpop.f32.mrf.mxu0
        %1253 = vdwg.mxu0
        %v1265 = vunpack.c.l.b16 %v1137
        %v1266 = vunpack.c.h.b16 %v1137
        %v1267 = vunpack.c.l.b16 %v1138
        %v1268 = vunpack.c.h.b16 %v1138
        %v1269 = vunpack.c.l.b16 %v1139
        %v1270 = vunpack.c.h.b16 %v1139
        %v1271 = vunpack.c.l.b16 %v1140
        %v1272 = vunpack.c.h.b16 %v1140
        %v1273 = vunpack.c.l.b16 %v1141
        %v1274 = vunpack.c.h.b16 %v1141
        %v1275 = vunpack.c.l.b16 %v1142
        %v1276 = vunpack.c.h.b16 %v1142
        %v1277 = vunpack.c.l.b16 %v1143
        %v1278 = vunpack.c.h.b16 %v1143
        %v1279 = vunpack.c.l.b16 %v1144
        %v1280 = vunpack.c.h.b16 %v1144
        %v1281 = vunpack.c.l.b16 %v1145
        %v1282 = vunpack.c.h.b16 %v1145
        %v1283 = vunpack.c.l.b16 %v1146
        %v1284 = vunpack.c.h.b16 %v1146
        %v1285 = vunpack.c.l.b16 %v1147
        %v1286 = vunpack.c.h.b16 %v1147
        %v1287 = vpack.c.b16 %v1267, %v1265
        %v1288 = vpack.c.b16 %v1268, %v1266
        %v1289 = vpack.c.b16 %v1271, %v1269
        %v1290 = vpack.c.b16 %v1272, %v1270
        %v1291 = vpack.c.b16 %v1275, %v1273
        %v1292 = vpack.c.b16 %v1276, %v1274
        %v1293 = vpack.c.b16 %v1279, %v1277
        %v1294 = vpack.c.b16 %v1280, %v1278
        %v1295 = vpack.c.b16 %v1283, %v1281
        %v1296 = vpack.c.b16 %v1284, %v1282
        %v1297 = vpack.c.b16 %v1285, %v1285
        %v1298 = vpack.c.b16 %v1286, %v1286
        %v1310 = vsel %vm1217, %v1136, 0
        %v1313 = vsel %vm1221, %v1297, 0
        %v1316 = vsel %vm1221, %v1298, 0
        %1318 = vmatpush.bf16.msra.mxu0 0
        %1319 = vmatpush.bf16.msra.mxu0 0
        %1320 = vmatpush.bf16.msra.mxu0 %v1313
        %1321 = vmatpush.bf16.msra.mxu0 %v1295
        %1322 = vmatpush.bf16.msra.mxu0 %v1293
        %1323 = vmatpush.bf16.msra.mxu0 %v1291
        %1324 = vmatpush.bf16.msra.mxu0 %v1289
        %1325 = vmatpush.bf16.msra.mxu0 %v1287
        %1326 = vmatmul.bf16.gmra.mxu0 %v1310
        %v1327 = vpop.f32.mrf.mxu0
        %v1328 = vadd.f32 %v1238, %v1327
        %v1329 = vpop.f32.mrf.mxu0
        %1330 = vdwg.mxu0
        %1331 = vmatpush.bf16.msra.mxu0 0
        %1332 = vmatpush.bf16.msra.mxu0 0
        %1333 = vmatpush.bf16.msra.mxu0 %v1316
        %1334 = vmatpush.bf16.msra.mxu0 %v1296
        %1335 = vmatpush.bf16.msra.mxu0 %v1294
        %1336 = vmatpush.bf16.msra.mxu0 %v1292
        %1337 = vmatpush.bf16.msra.mxu0 %v1290
        %1338 = vmatpush.bf16.msra.mxu0 %v1288
        %1339 = vmatmul.bf16.gmra.mxu0 %v1310
        %v1340 = vpop.f32.mrf.mxu0
        %v1341 = vadd.f32 %v1251, %v1340
        %v1342 = vpop.f32.mrf.mxu0
        %1343 = vdwg.mxu0
        %v1344 = vld [vmem:[#allocation2 + $0x1] sm:$0x1f]
        %v1345 = vpack.c.bf16 %v1344, %v1344
        %s1346 = scalar_lea.vmem %s3, 176
        %v1347 = vld [vmem:[%s1346] sm:$0xff]
        %v1348 = vld [vmem:[%s1346 + $0x8] sm:$0xff]
        %v1349 = vld [vmem:[%s1346 + $0x10] sm:$0xff]
        %v1350 = vld [vmem:[%s1346 + $0x18] sm:$0xff]
        %v1351 = vld [vmem:[%s1346 + $0x20] sm:$0xff]
        %v1352 = vld [vmem:[%s1346 + $0x28] sm:$0xff]
        %v1353 = vld [vmem:[%s1346 + $0x30] sm:$0xff]
        %v1354 = vld [vmem:[%s1346 + $0x38] sm:$0xff]
        %v1355 = vld [vmem:[%s1346 + $0x40] sm:$0xff]
        %v1356 = vld [vmem:[%s1346 + $0x48] sm:$0xff]
        %v1357 = vld [vmem:[%s1346 + $0x50] sm:$0x33]
        %v1369 = vunpack.c.l.b16 %v1347
        %v1370 = vunpack.c.h.b16 %v1347
        %v1371 = vunpack.c.l.b16 %v1348
        %v1372 = vunpack.c.h.b16 %v1348
        %v1373 = vunpack.c.l.b16 %v1349
        %v1374 = vunpack.c.h.b16 %v1349
        %v1375 = vunpack.c.l.b16 %v1350
        %v1376 = vunpack.c.h.b16 %v1350
        %v1377 = vunpack.c.l.b16 %v1351
        %v1378 = vunpack.c.h.b16 %v1351
        %v1379 = vunpack.c.l.b16 %v1352
        %v1380 = vunpack.c.h.b16 %v1352
        %v1381 = vunpack.c.l.b16 %v1353
        %v1382 = vunpack.c.h.b16 %v1353
        %v1383 = vunpack.c.l.b16 %v1354
        %v1384 = vunpack.c.h.b16 %v1354
        %v1385 = vunpack.c.l.b16 %v1355
        %v1386 = vunpack.c.h.b16 %v1355
        %v1387 = vunpack.c.l.b16 %v1356
        %v1388 = vunpack.c.h.b16 %v1356
        %v1389 = vunpack.c.l.b16 %v1357
        %v1390 = vunpack.c.h.b16 %v1357
        %v1391 = vpack.c.b16 %v1371, %v1369
        %v1392 = vpack.c.b16 %v1372, %v1370
        %v1393 = vpack.c.b16 %v1375, %v1373
        %v1394 = vpack.c.b16 %v1376, %v1374
        %v1395 = vpack.c.b16 %v1379, %v1377
        %v1396 = vpack.c.b16 %v1380, %v1378
        %v1397 = vpack.c.b16 %v1383, %v1381
        %v1398 = vpack.c.b16 %v1384, %v1382
        %v1399 = vpack.c.b16 %v1387, %v1385
        %v1400 = vpack.c.b16 %v1388, %v1386
        %v1401 = vpack.c.b16 %v1389, %v1389
        %v1402 = vpack.c.b16 %v1390, %v1390
        %v1414 = vsel %vm1217, %v1345, 0
        %v1417 = vsel %vm1221, %v1401, 0
        %v1420 = vsel %vm1221, %v1402, 0
        %1422 = vmatpush.bf16.msra.mxu0 0
        %1423 = vmatpush.bf16.msra.mxu0 0
        %1424 = vmatpush.bf16.msra.mxu0 %v1417
        %1425 = vmatpush.bf16.msra.mxu0 %v1399
        %1426 = vmatpush.bf16.msra.mxu0 %v1397
        %1427 = vmatpush.bf16.msra.mxu0 %v1395
        %1428 = vmatpush.bf16.msra.mxu0 %v1393
        %1429 = vmatpush.bf16.msra.mxu0 %v1391
        %1430 = vmatmul.bf16.gmra.mxu0 %v1414
        %v1431 = vpop.f32.mrf.mxu0
        %v1432 = vadd.f32 0.0, %v1431
        %v1433 = vpop.f32.mrf.mxu0
        %1434 = vdwg.mxu0
        %1435 = vmatpush.bf16.msra.mxu0 0
        %1436 = vmatpush.bf16.msra.mxu0 0
        %1437 = vmatpush.bf16.msra.mxu0 %v1420
        %1438 = vmatpush.bf16.msra.mxu0 %v1400
        %1439 = vmatpush.bf16.msra.mxu0 %v1398
        %1440 = vmatpush.bf16.msra.mxu0 %v1396
        %1441 = vmatpush.bf16.msra.mxu0 %v1394
        %1442 = vmatpush.bf16.msra.mxu0 %v1392
        %1443 = vmatmul.bf16.gmra.mxu0 %v1414
        %v1444 = vpop.f32.mrf.mxu0
        %v1445 = vadd.f32 0.0, %v1444
        %v1446 = vpop.f32.mrf.mxu0
        %1447 = vdwg.mxu0
        %v1448 = vadd.f32 %v1328, %v1432
        %v1449 = vadd.f32 %v1341, %v1445
        %v1450 = vld [vmem:[#allocation3 + $0x1] sm:$0x1f]
        %v1451 = vpack.c.bf16 %v1450, %v1450
        %s1452 = scalar_lea.vmem %s3, 264
        %v1453 = vld [vmem:[%s1452] sm:$0xff]
        %v1454 = vld [vmem:[%s1452 + $0x8] sm:$0xff]
        %v1455 = vld [vmem:[%s1452 + $0x10] sm:$0xff]
        %v1456 = vld [vmem:[%s1452 + $0x18] sm:$0xff]
        %v1457 = vld [vmem:[%s1452 + $0x20] sm:$0xff]
        %v1458 = vld [vmem:[%s1452 + $0x28] sm:$0xff]
        %v1459 = vld [vmem:[%s1452 + $0x30] sm:$0xff]
        %v1460 = vld [vmem:[%s1452 + $0x38] sm:$0xff]
        %v1461 = vld [vmem:[%s1452 + $0x40] sm:$0xff]
        %v1462 = vld [vmem:[%s1452 + $0x48] sm:$0xff]
        %v1463 = vld [vmem:[%s1452 + $0x50] sm:$0x33]
        %v1475 = vunpack.c.l.b16 %v1453
        %v1476 = vunpack.c.h.b16 %v1453
        %v1477 = vunpack.c.l.b16 %v1454
        %v1478 = vunpack.c.h.b16 %v1454
        %v1479 = vunpack.c.l.b16 %v1455
        %v1480 = vunpack.c.h.b16 %v1455
        %v1481 = vunpack.c.l.b16 %v1456
        %v1482 = vunpack.c.h.b16 %v1456
        %v1483 = vunpack.c.l.b16 %v1457
        %v1484 = vunpack.c.h.b16 %v1457
        %v1485 = vunpack.c.l.b16 %v1458
        %v1486 = vunpack.c.h.b16 %v1458
        %v1487 = vunpack.c.l.b16 %v1459
        %v1488 = vunpack.c.h.b16 %v1459
        %v1489 = vunpack.c.l.b16 %v1460
        %v1490 = vunpack.c.h.b16 %v1460
        %v1491 = vunpack.c.l.b16 %v1461
        %v1492 = vunpack.c.h.b16 %v1461
        %v1493 = vunpack.c.l.b16 %v1462
        %v1494 = vunpack.c.h.b16 %v1462
        %v1495 = vunpack.c.l.b16 %v1463
        %v1496 = vunpack.c.h.b16 %v1463
        %v1497 = vpack.c.b16 %v1477, %v1475
        %v1498 = vpack.c.b16 %v1478, %v1476
        %v1499 = vpack.c.b16 %v1481, %v1479
        %v1500 = vpack.c.b16 %v1482, %v1480
        %v1501 = vpack.c.b16 %v1485, %v1483
        %v1502 = vpack.c.b16 %v1486, %v1484
        %v1503 = vpack.c.b16 %v1489, %v1487
        %v1504 = vpack.c.b16 %v1490, %v1488
        %v1505 = vpack.c.b16 %v1493, %v1491
        %v1506 = vpack.c.b16 %v1494, %v1492
        %v1507 = vpack.c.b16 %v1495, %v1495
        %v1508 = vpack.c.b16 %v1496, %v1496
        %v1520 = vsel %vm1217, %v1451, 0
        %v1523 = vsel %vm1221, %v1507, 0
        %v1526 = vsel %vm1221, %v1508, 0
        %1528 = vmatpush.bf16.msra.mxu0 0
        %1529 = vmatpush.bf16.msra.mxu0 0
        %1530 = vmatpush.bf16.msra.mxu0 %v1523
        %1531 = vmatpush.bf16.msra.mxu0 %v1505
        %1532 = vmatpush.bf16.msra.mxu0 %v1503
        %1533 = vmatpush.bf16.msra.mxu0 %v1501
        %1534 = vmatpush.bf16.msra.mxu0 %v1499
        %1535 = vmatpush.bf16.msra.mxu0 %v1497
        %1536 = vmatmul.bf16.gmra.mxu0 %v1520
        %v1537 = vpop.f32.mrf.mxu0
        %v1538 = vadd.f32 0.0, %v1537
        %v1539 = vpop.f32.mrf.mxu0
        %1540 = vdwg.mxu0
        %1541 = vmatpush.bf16.msra.mxu0 0
        %1542 = vmatpush.bf16.msra.mxu0 0
        %1543 = vmatpush.bf16.msra.mxu0 %v1526
        %1544 = vmatpush.bf16.msra.mxu0 %v1506
        %1545 = vmatpush.bf16.msra.mxu0 %v1504
        %1546 = vmatpush.bf16.msra.mxu0 %v1502
        %1547 = vmatpush.bf16.msra.mxu0 %v1500
        %1548 = vmatpush.bf16.msra.mxu0 %v1498
        %1549 = vmatmul.bf16.gmra.mxu0 %v1520
        %v1550 = vpop.f32.mrf.mxu0
        %v1551 = vadd.f32 0.0, %v1550
        %v1552 = vpop.f32.mrf.mxu0
        %1553 = vdwg.mxu0
        %v1554 = vadd.f32 %v1448, %v1538
        %v1555 = vadd.f32 %v1449, %v1551
        %v1556 = vld [vmem:[#allocation2 + $0x2] sm:$0x1f]
        %v1557 = vpack.c.bf16 %v1556, %v1556
        %s1558 = scalar_lea.vmem %s3, 352
        %v1559 = vld [vmem:[%s1558] sm:$0xff]
        %v1560 = vld [vmem:[%s1558 + $0x8] sm:$0xff]
        %v1561 = vld [vmem:[%s1558 + $0x10] sm:$0xff]
        %v1562 = vld [vmem:[%s1558 + $0x18] sm:$0xff]
        %v1563 = vld [vmem:[%s1558 + $0x20] sm:$0xff]
        %v1564 = vld [vmem:[%s1558 + $0x28] sm:$0xff]
        %v1565 = vld [vmem:[%s1558 + $0x30] sm:$0xff]
        %v1566 = vld [vmem:[%s1558 + $0x38] sm:$0xff]
        %v1567 = vld [vmem:[%s1558 + $0x40] sm:$0xff]
        %v1568 = vld [vmem:[%s1558 + $0x48] sm:$0xff]
        %v1569 = vld [vmem:[%s1558 + $0x50] sm:$0x33]
        %v1581 = vunpack.c.l.b16 %v1559
        %v1582 = vunpack.c.h.b16 %v1559
        %v1583 = vunpack.c.l.b16 %v1560
        %v1584 = vunpack.c.h.b16 %v1560
        %v1585 = vunpack.c.l.b16 %v1561
        %v1586 = vunpack.c.h.b16 %v1561
        %v1587 = vunpack.c.l.b16 %v1562
        %v1588 = vunpack.c.h.b16 %v1562
        %v1589 = vunpack.c.l.b16 %v1563
        %v1590 = vunpack.c.h.b16 %v1563
        %v1591 = vunpack.c.l.b16 %v1564
        %v1592 = vunpack.c.h.b16 %v1564
        %v1593 = vunpack.c.l.b16 %v1565
        %v1594 = vunpack.c.h.b16 %v1565
        %v1595 = vunpack.c.l.b16 %v1566
        %v1596 = vunpack.c.h.b16 %v1566
        %v1597 = vunpack.c.l.b16 %v1567
        %v1598 = vunpack.c.h.b16 %v1567
        %v1599 = vunpack.c.l.b16 %v1568
        %v1600 = vunpack.c.h.b16 %v1568
        %v1601 = vunpack.c.l.b16 %v1569
        %v1602 = vunpack.c.h.b16 %v1569
        %v1603 = vpack.c.b16 %v1583, %v1581
        %v1604 = vpack.c.b16 %v1584, %v1582
        %v1605 = vpack.c.b16 %v1587, %v1585
        %v1606 = vpack.c.b16 %v1588, %v1586
        %v1607 = vpack.c.b16 %v1591, %v1589
        %v1608 = vpack.c.b16 %v1592, %v1590
        %v1609 = vpack.c.b16 %v1595, %v1593
        %v1610 = vpack.c.b16 %v1596, %v1594
        %v1611 = vpack.c.b16 %v1599, %v1597
        %v1612 = vpack.c.b16 %v1600, %v1598
        %v1613 = vpack.c.b16 %v1601, %v1601
        %v1614 = vpack.c.b16 %v1602, %v1602
        %v1626 = vsel %vm1217, %v1557, 0
        %v1629 = vsel %vm1221, %v1613, 0
        %v1632 = vsel %vm1221, %v1614, 0
        %1634 = vmatpush.bf16.msra.mxu0 0
        %1635 = vmatpush.bf16.msra.mxu0 0
        %1636 = vmatpush.bf16.msra.mxu0 %v1629
        %1637 = vmatpush.bf16.msra.mxu0 %v1611
        %1638 = vmatpush.bf16.msra.mxu0 %v1609
        %1639 = vmatpush.bf16.msra.mxu0 %v1607
        %1640 = vmatpush.bf16.msra.mxu0 %v1605
        %1641 = vmatpush.bf16.msra.mxu0 %v1603
        %1642 = vmatmul.bf16.gmra.mxu0 %v1626
        %v1643 = vpop.f32.mrf.mxu0
        %v1644 = vadd.f32 0.0, %v1643
        %v1645 = vpop.f32.mrf.mxu0
        %1646 = vdwg.mxu0
        %1647 = vmatpush.bf16.msra.mxu0 0
        %1648 = vmatpush.bf16.msra.mxu0 0
        %1649 = vmatpush.bf16.msra.mxu0 %v1632
        %1650 = vmatpush.bf16.msra.mxu0 %v1612
        %1651 = vmatpush.bf16.msra.mxu0 %v1610
        %1652 = vmatpush.bf16.msra.mxu0 %v1608
        %1653 = vmatpush.bf16.msra.mxu0 %v1606
        %1654 = vmatpush.bf16.msra.mxu0 %v1604
        %1655 = vmatmul.bf16.gmra.mxu0 %v1626
        %v1656 = vpop.f32.mrf.mxu0
        %v1657 = vadd.f32 0.0, %v1656
        %v1658 = vpop.f32.mrf.mxu0
        %1659 = vdwg.mxu0
        %v1660 = vadd.f32 %v1554, %v1644
        %v1661 = vadd.f32 %v1555, %v1657
        %1662 = vmatpush.bf16.msra.mxu0 0
        %1663 = vmatpush.bf16.msra.mxu0 0
        %1664 = vmatpush.bf16.msra.mxu0 %v1223
        %1665 = vmatpush.bf16.msra.mxu0 %v1203
        %1666 = vmatpush.bf16.msra.mxu0 %v1201
        %1667 = vmatpush.bf16.msra.mxu0 %v1199
        %1668 = vmatpush.bf16.msra.mxu0 %v1197
        %1669 = vmatpush.bf16.msra.mxu0 %v1195
        %1670 = vmatmul.bf16.gmra.mxu0 %v1414
        %v1671 = vpop.f32.mrf.mxu0
        %v1672 = vadd.f32 0.0, %v1671
        %v1673 = vpop.f32.mrf.mxu0
        %1674 = vdwg.mxu0
        %1675 = vmatpush.bf16.msra.mxu0 0
        %1676 = vmatpush.bf16.msra.mxu0 0
        %1677 = vmatpush.bf16.msra.mxu0 %v1226
        %1678 = vmatpush.bf16.msra.mxu0 %v1204
        %1679 = vmatpush.bf16.msra.mxu0 %v1202
        %1680 = vmatpush.bf16.msra.mxu0 %v1200
        %1681 = vmatpush.bf16.msra.mxu0 %v1198
        %1682 = vmatpush.bf16.msra.mxu0 %v1196
        %1683 = vmatmul.bf16.gmra.mxu0 %v1414
        %v1684 = vpop.f32.mrf.mxu0
        %v1685 = vadd.f32 0.0, %v1684
        %v1686 = vpop.f32.mrf.mxu0
        %1687 = vdwg.mxu0
        %1688 = vmatpush.bf16.msra.mxu0 0
        %1689 = vmatpush.bf16.msra.mxu0 0
        %1690 = vmatpush.bf16.msra.mxu0 %v1313
        %1691 = vmatpush.bf16.msra.mxu0 %v1295
        %1692 = vmatpush.bf16.msra.mxu0 %v1293
        %1693 = vmatpush.bf16.msra.mxu0 %v1291
        %1694 = vmatpush.bf16.msra.mxu0 %v1289
        %1695 = vmatpush.bf16.msra.mxu0 %v1287
        %1696 = vmatmul.bf16.gmra.mxu0 %v1219
        %v1697 = vpop.f32.mrf.mxu0
        %v1698 = vadd.f32 %v1672, %v1697
        %v1699 = vpop.f32.mrf.mxu0
        %1700 = vdwg.mxu0
        %1701 = vmatpush.bf16.msra.mxu0 0
        %1702 = vmatpush.bf16.msra.mxu0 0
        %1703 = vmatpush.bf16.msra.mxu0 %v1316
        %1704 = vmatpush.bf16.msra.mxu0 %v1296
        %1705 = vmatpush.bf16.msra.mxu0 %v1294
        %1706 = vmatpush.bf16.msra.mxu0 %v1292
        %1707 = vmatpush.bf16.msra.mxu0 %v1290
        %1708 = vmatpush.bf16.msra.mxu0 %v1288
        %1709 = vmatmul.bf16.gmra.mxu0 %v1219
        %v1710 = vpop.f32.mrf.mxu0
        %v1711 = vadd.f32 %v1685, %v1710
        %v1712 = vpop.f32.mrf.mxu0
        %1713 = vdwg.mxu0
        %1714 = vmatpush.bf16.msra.mxu0 0
        %1715 = vmatpush.bf16.msra.mxu0 0
        %1716 = vmatpush.bf16.msra.mxu0 %v1417
        %1717 = vmatpush.bf16.msra.mxu0 %v1399
        %1718 = vmatpush.bf16.msra.mxu0 %v1397
        %1719 = vmatpush.bf16.msra.mxu0 %v1395
        %1720 = vmatpush.bf16.msra.mxu0 %v1393
        %1721 = vmatpush.bf16.msra.mxu0 %v1391
        %1722 = vmatmul.bf16.gmra.mxu0 %v1520
        %v1723 = vpop.f32.mrf.mxu0
        %v1724 = vadd.f32 0.0, %v1723
        %v1725 = vpop.f32.mrf.mxu0
        %1726 = vdwg.mxu0
        %1727 = vmatpush.bf16.msra.mxu0 0
        %1728 = vmatpush.bf16.msra.mxu0 0
        %1729 = vmatpush.bf16.msra.mxu0 %v1420
        %1730 = vmatpush.bf16.msra.mxu0 %v1400
        %1731 = vmatpush.bf16.msra.mxu0 %v1398
        %1732 = vmatpush.bf16.msra.mxu0 %v1396
        %1733 = vmatpush.bf16.msra.mxu0 %v1394
        %1734 = vmatpush.bf16.msra.mxu0 %v1392
        %1735 = vmatmul.bf16.gmra.mxu0 %v1520
        %v1736 = vpop.f32.mrf.mxu0
        %v1737 = vadd.f32 0.0, %v1736
        %v1738 = vpop.f32.mrf.mxu0
        %1739 = vdwg.mxu0
        %v1740 = vadd.f32 %v1698, %v1724
        %v1741 = vadd.f32 %v1711, %v1737
        %1742 = vmatpush.bf16.msra.mxu0 0
        %1743 = vmatpush.bf16.msra.mxu0 0
        %1744 = vmatpush.bf16.msra.mxu0 %v1523
        %1745 = vmatpush.bf16.msra.mxu0 %v1505
        %1746 = vmatpush.bf16.msra.mxu0 %v1503
        %1747 = vmatpush.bf16.msra.mxu0 %v1501
        %1748 = vmatpush.bf16.msra.mxu0 %v1499
        %1749 = vmatpush.bf16.msra.mxu0 %v1497
        %1750 = vmatmul.bf16.gmra.mxu0 %v1626
        %v1751 = vpop.f32.mrf.mxu0
        %v1752 = vadd.f32 0.0, %v1751
        %v1753 = vpop.f32.mrf.mxu0
        %1754 = vdwg.mxu0
        %1755 = vmatpush.bf16.msra.mxu0 0
        %1756 = vmatpush.bf16.msra.mxu0 0
        %1757 = vmatpush.bf16.msra.mxu0 %v1526
        %1758 = vmatpush.bf16.msra.mxu0 %v1506
        %1759 = vmatpush.bf16.msra.mxu0 %v1504
        %1760 = vmatpush.bf16.msra.mxu0 %v1502
        %1761 = vmatpush.bf16.msra.mxu0 %v1500
        %1762 = vmatpush.bf16.msra.mxu0 %v1498
        %1763 = vmatmul.bf16.gmra.mxu0 %v1626
        %v1764 = vpop.f32.mrf.mxu0
        %v1765 = vadd.f32 0.0, %v1764
        %v1766 = vpop.f32.mrf.mxu0
        %1767 = vdwg.mxu0
        %v1768 = vadd.f32 %v1740, %v1752
        %v1769 = vadd.f32 %v1741, %v1765
        %v1770 = vld [vmem:[#allocation3 + $0x2] sm:$0x1f]
        %v1771 = vpack.c.bf16 %v1770, %v1770
        %v1773 = vsel %vm1217, %v1771, 0
        %1775 = vmatpush.bf16.msra.mxu0 0
        %1776 = vmatpush.bf16.msra.mxu0 0
        %1777 = vmatpush.bf16.msra.mxu0 %v1629
        %1778 = vmatpush.bf16.msra.mxu0 %v1611
        %1779 = vmatpush.bf16.msra.mxu0 %v1609
        %1780 = vmatpush.bf16.msra.mxu0 %v1607
        %1781 = vmatpush.bf16.msra.mxu0 %v1605
        %1782 = vmatpush.bf16.msra.mxu0 %v1603
        %1783 = vmatmul.bf16.gmra.mxu0 %v1773
        %v1784 = vpop.f32.mrf.mxu0
        %v1785 = vadd.f32 0.0, %v1784
        %v1786 = vpop.f32.mrf.mxu0
        %1787 = vdwg.mxu0
        %1788 = vmatpush.bf16.msra.mxu0 0
        %1789 = vmatpush.bf16.msra.mxu0 0
        %1790 = vmatpush.bf16.msra.mxu0 %v1632
        %1791 = vmatpush.bf16.msra.mxu0 %v1612
        %1792 = vmatpush.bf16.msra.mxu0 %v1610
        %1793 = vmatpush.bf16.msra.mxu0 %v1608
        %1794 = vmatpush.bf16.msra.mxu0 %v1606
        %1795 = vmatpush.bf16.msra.mxu0 %v1604
        %1796 = vmatmul.bf16.gmra.mxu0 %v1773
        %v1797 = vpop.f32.mrf.mxu0
        %v1798 = vadd.f32 0.0, %v1797
        %v1799 = vpop.f32.mrf.mxu0
        %1800 = vdwg.mxu0
        %v1801 = vadd.f32 %v1768, %v1785
        %v1802 = vadd.f32 %v1769, %v1798
        %v1803 = vmax.f32 %v1660, %v1801
        %v1804 = vmax.f32 %v1661, %v1802
        %1807 = vrot.lane.b32.xlu0 %v1803, 48
        %v1808 = vpop.permute.xlu0 %1807
        %1809 = vrot.lane.b32.xlu0 %v1804, 48
        %v1810 = vpop.permute.xlu0 %1809
        %vm1811 = vcmask 392192
        %v1812 = vsel %vm1811, %v1808, %v1810
        %v1814 = vmax.f32 %v1803, %v1812
        %v1815 = vld [vmem:[%s4] sm:$0x1]
        %v1817 = vperm.slane %v1815, 0
        %v1819 = vadd.f32 %v1814, %v1817
        %v1820 = vmax.f32 %v1819, 0.0
        %vm1821 = vcmask 651264
        %1822 = vst.msk [vmem:[#allocation4] sm:$0x1f] %vm1821, %v1820
        %v1823 = vld [vmem:[#allocation4] sm:$0x1]
        %v1824 = vpack.c.bf16 %v1823, %v1823
        %v1825 = vld [vmem:[%s5] sm:$0xf]
        %v1826 = vld [vmem:[%s5 + $0x4] sm:$0xf]
        %v1827 = vld [vmem:[%s5 + $0x8] sm:$0xf]
        %v1828 = vld [vmem:[%s5 + $0xc] sm:$0xf]
        %v1829 = vld [vmem:[%s5 + $0x10] sm:$0xf]
        %v1830 = vld [vmem:[%s5 + $0x14] sm:$0xf]
        %v1831 = vld [vmem:[%s5 + $0x18] sm:$0xf]
        %v1832 = vld [vmem:[%s5 + $0x1c] sm:$0xf]
        %v1833 = vld [vmem:[%s5 + $0x20] sm:$0xf]
        %v1834 = vld [vmem:[%s5 + $0x24] sm:$0xf]
        %v1835 = vld [vmem:[#allocation4 + $0x1] sm:$0x1]
        %v1836 = vpack.c.bf16 %v1835, %v1835
        %s1837 = scalar_lea.vmem %s5, 40
        %v1838 = vld [vmem:[%s1837] sm:$0xf]
        %v1839 = vld [vmem:[%s1837 + $0x4] sm:$0xf]
        %v1840 = vld [vmem:[%s1837 + $0x8] sm:$0xf]
        %v1841 = vld [vmem:[%s1837 + $0xc] sm:$0xf]
        %v1842 = vld [vmem:[%s1837 + $0x10] sm:$0xf]
        %v1843 = vld [vmem:[%s1837 + $0x14] sm:$0xf]
        %v1844 = vld [vmem:[%s1837 + $0x18] sm:$0xf]
        %v1845 = vld [vmem:[%s1837 + $0x1c] sm:$0xf]
        %v1846 = vld [vmem:[%s1837 + $0x20] sm:$0xf]
        %v1847 = vld [vmem:[%s1837 + $0x24] sm:$0xf]
        %v1858 = vunpack.c.l.b16 %v1838
        %v1859 = vunpack.c.l.b16 %v1839
        %v1860 = vunpack.c.l.b16 %v1840
        %v1861 = vunpack.c.l.b16 %v1841
        %v1862 = vunpack.c.l.b16 %v1842
        %v1863 = vunpack.c.l.b16 %v1843
        %v1864 = vunpack.c.l.b16 %v1844
        %v1865 = vunpack.c.l.b16 %v1845
        %v1866 = vunpack.c.l.b16 %v1846
        %v1867 = vunpack.c.l.b16 %v1847
        %v1868 = vpack.c.b16 %v1859, %v1858
        %v1869 = vpack.c.b16 %v1861, %v1860
        %v1870 = vpack.c.b16 %v1863, %v1862
        %v1871 = vpack.c.b16 %v1865, %v1864
        %v1872 = vpack.c.b16 %v1867, %v1866
        %vm1878 = vcmask 654336
        %v1880 = vsel %vm1878, %v1836, 0
        %1882 = vmatpush.bf16.msra.mxu0 0
        %1883 = vmatpush.bf16.msra.mxu0 0
        %1884 = vmatpush.bf16.msra.mxu0 0
        %1885 = vmatpush.bf16.msra.mxu0 %v1872
        %1886 = vmatpush.bf16.msra.mxu0 %v1871
        %1887 = vmatpush.bf16.msra.mxu0 %v1870
        %1888 = vmatpush.bf16.msra.mxu0 %v1869
        %1889 = vmatpush.bf16.msra.mxu0 %v1868
        %1890 = vmatmul.bf16.gmra.mxu0 %v1880
        %v1891 = vpop.f32.mrf.mxu0
        %v1892 = vadd.f32 0.0, %v1891
        %v1893 = vpop.f32.mrf.mxu0
        %1894 = vdwg.mxu0
        %v1905 = vunpack.c.l.b16 %v1825
        %v1906 = vunpack.c.l.b16 %v1826
        %v1907 = vunpack.c.l.b16 %v1827
        %v1908 = vunpack.c.l.b16 %v1828
        %v1909 = vunpack.c.l.b16 %v1829
        %v1910 = vunpack.c.l.b16 %v1830
        %v1911 = vunpack.c.l.b16 %v1831
        %v1912 = vunpack.c.l.b16 %v1832
        %v1913 = vunpack.c.l.b16 %v1833
        %v1914 = vunpack.c.l.b16 %v1834
        %v1915 = vpack.c.b16 %v1906, %v1905
        %v1916 = vpack.c.b16 %v1908, %v1907
        %v1917 = vpack.c.b16 %v1910, %v1909
        %v1918 = vpack.c.b16 %v1912, %v1911
        %v1919 = vpack.c.b16 %v1914, %v1913
        %v1926 = vsel %vm1878, %v1824, 0
        %1928 = vmatpush.bf16.msra.mxu0 0
        %1929 = vmatpush.bf16.msra.mxu0 0
        %1930 = vmatpush.bf16.msra.mxu0 0
        %1931 = vmatpush.bf16.msra.mxu0 %v1919
        %1932 = vmatpush.bf16.msra.mxu0 %v1918
        %1933 = vmatpush.bf16.msra.mxu0 %v1917
        %1934 = vmatpush.bf16.msra.mxu0 %v1916
        %1935 = vmatpush.bf16.msra.mxu0 %v1915
        %1936 = vmatmul.bf16.gmra.mxu0 %v1926
        %v1937 = vpop.f32.mrf.mxu0
        %v1938 = vadd.f32 %v1892, %v1937
        %v1939 = vpop.f32.mrf.mxu0
        %1940 = vdwg.mxu0
        %v1941 = vld [vmem:[#allocation4 + $0x2] sm:$0x1]
        %v1942 = vpack.c.bf16 %v1941, %v1941
        %s1943 = scalar_lea.vmem %s5, 80
        %v1944 = vld [vmem:[%s1943] sm:$0xf]
        %v1945 = vld [vmem:[%s1943 + $0x4] sm:$0xf]
        %v1946 = vld [vmem:[%s1943 + $0x8] sm:$0xf]
        %v1947 = vld [vmem:[%s1943 + $0xc] sm:$0xf]
        %v1948 = vld [vmem:[%s1943 + $0x10] sm:$0xf]
        %v1949 = vld [vmem:[%s1943 + $0x14] sm:$0xf]
        %v1950 = vld [vmem:[%s1943 + $0x18] sm:$0xf]
        %v1951 = vld [vmem:[%s1943 + $0x1c] sm:$0xf]
        %v1952 = vld [vmem:[%s1943 + $0x20] sm:$0xf]
        %v1953 = vld [vmem:[%s1943 + $0x24] sm:$0xf]
        %v1964 = vunpack.c.l.b16 %v1944
        %v1965 = vunpack.c.l.b16 %v1945
        %v1966 = vunpack.c.l.b16 %v1946
        %v1967 = vunpack.c.l.b16 %v1947
        %v1968 = vunpack.c.l.b16 %v1948
        %v1969 = vunpack.c.l.b16 %v1949
        %v1970 = vunpack.c.l.b16 %v1950
        %v1971 = vunpack.c.l.b16 %v1951
        %v1972 = vunpack.c.l.b16 %v1952
        %v1973 = vunpack.c.l.b16 %v1953
        %v1974 = vpack.c.b16 %v1965, %v1964
        %v1975 = vpack.c.b16 %v1967, %v1966
        %v1976 = vpack.c.b16 %v1969, %v1968
        %v1977 = vpack.c.b16 %v1971, %v1970
        %v1978 = vpack.c.b16 %v1973, %v1972
        %v1985 = vsel %vm1878, %v1942, 0
        %1987 = vmatpush.bf16.msra.mxu0 0
        %1988 = vmatpush.bf16.msra.mxu0 0
        %1989 = vmatpush.bf16.msra.mxu0 0
        %1990 = vmatpush.bf16.msra.mxu0 %v1978
        %1991 = vmatpush.bf16.msra.mxu0 %v1977
        %1992 = vmatpush.bf16.msra.mxu0 %v1976
        %1993 = vmatpush.bf16.msra.mxu0 %v1975
        %1994 = vmatpush.bf16.msra.mxu0 %v1974
        %1995 = vmatmul.bf16.gmra.mxu0 %v1985
        %v1996 = vpop.f32.mrf.mxu0
        %v1997 = vadd.f32 0.0, %v1996
        %v1998 = vpop.f32.mrf.mxu0
        %1999 = vdwg.mxu0
        %v2000 = vadd.f32 %v1938, %v1997
        %v2001 = vld [vmem:[#allocation4 + $0x3] sm:$0x1]
        %v2002 = vpack.c.bf16 %v2001, %v2001
        %s2003 = scalar_lea.vmem %s5, 120
        %v2004 = vld [vmem:[%s2003] sm:$0xf]
        %v2005 = vld [vmem:[%s2003 + $0x4] sm:$0xf]
        %v2006 = vld [vmem:[%s2003 + $0x8] sm:$0xf]
        %v2007 = vld [vmem:[%s2003 + $0xc] sm:$0xf]
        %v2008 = vld [vmem:[%s2003 + $0x10] sm:$0xf]
        %v2009 = vld [vmem:[%s2003 + $0x14] sm:$0xf]
        %v2010 = vld [vmem:[%s2003 + $0x18] sm:$0xf]
        %v2011 = vld [vmem:[%s2003 + $0x1c] sm:$0xf]
        %v2012 = vld [vmem:[%s2003 + $0x20] sm:$0xf]
        %v2013 = vld [vmem:[%s2003 + $0x24] sm:$0xf]
        %v2024 = vunpack.c.l.b16 %v2004
        %v2025 = vunpack.c.l.b16 %v2005
        %v2026 = vunpack.c.l.b16 %v2006
        %v2027 = vunpack.c.l.b16 %v2007
        %v2028 = vunpack.c.l.b16 %v2008
        %v2029 = vunpack.c.l.b16 %v2009
        %v2030 = vunpack.c.l.b16 %v2010
        %v2031 = vunpack.c.l.b16 %v2011
        %v2032 = vunpack.c.l.b16 %v2012
        %v2033 = vunpack.c.l.b16 %v2013
        %v2034 = vpack.c.b16 %v2025, %v2024
        %v2035 = vpack.c.b16 %v2027, %v2026
        %v2036 = vpack.c.b16 %v2029, %v2028
        %v2037 = vpack.c.b16 %v2031, %v2030
        %v2038 = vpack.c.b16 %v2033, %v2032
        %v2045 = vsel %vm1878, %v2002, 0
        %2047 = vmatpush.bf16.msra.mxu0 0
        %2048 = vmatpush.bf16.msra.mxu0 0
        %2049 = vmatpush.bf16.msra.mxu0 0
        %2050 = vmatpush.bf16.msra.mxu0 %v2038
        %2051 = vmatpush.bf16.msra.mxu0 %v2037
        %2052 = vmatpush.bf16.msra.mxu0 %v2036
        %2053 = vmatpush.bf16.msra.mxu0 %v2035
        %2054 = vmatpush.bf16.msra.mxu0 %v2034
        %2055 = vmatmul.bf16.gmra.mxu0 %v2045
        %v2056 = vpop.f32.mrf.mxu0
        %v2057 = vadd.f32 0.0, %v2056
        %v2058 = vpop.f32.mrf.mxu0
        %2059 = vdwg.mxu0
        %v2060 = vadd.f32 %v2000, %v2057
        %v2061 = vld [vmem:[#allocation4 + $0x4] sm:$0x1]
        %v2062 = vpack.c.bf16 %v2061, %v2061
        %s2063 = scalar_lea.vmem %s5, 160
        %v2064 = vld [vmem:[%s2063] sm:$0xf]
        %v2065 = vld [vmem:[%s2063 + $0x4] sm:$0xf]
        %v2066 = vld [vmem:[%s2063 + $0x8] sm:$0xf]
        %v2067 = vld [vmem:[%s2063 + $0xc] sm:$0xf]
        %v2068 = vld [vmem:[%s2063 + $0x10] sm:$0xf]
        %v2069 = vld [vmem:[%s2063 + $0x14] sm:$0xf]
        %v2070 = vld [vmem:[%s2063 + $0x18] sm:$0xf]
        %v2071 = vld [vmem:[%s2063 + $0x1c] sm:$0xf]
        %v2072 = vld [vmem:[%s2063 + $0x20] sm:$0xf]
        %v2073 = vld [vmem:[%s2063 + $0x24] sm:$0xf]
        %v2084 = vunpack.c.l.b16 %v2064
        %v2085 = vunpack.c.l.b16 %v2065
        %v2086 = vunpack.c.l.b16 %v2066
        %v2087 = vunpack.c.l.b16 %v2067
        %v2088 = vunpack.c.l.b16 %v2068
        %v2089 = vunpack.c.l.b16 %v2069
        %v2090 = vunpack.c.l.b16 %v2070
        %v2091 = vunpack.c.l.b16 %v2071
        %v2092 = vunpack.c.l.b16 %v2072
        %v2093 = vunpack.c.l.b16 %v2073
        %v2094 = vpack.c.b16 %v2085, %v2084
        %v2095 = vpack.c.b16 %v2087, %v2086
        %v2096 = vpack.c.b16 %v2089, %v2088
        %v2097 = vpack.c.b16 %v2091, %v2090
        %v2098 = vpack.c.b16 %v2093, %v2092
        %v2105 = vsel %vm1878, %v2062, 0
        %2107 = vmatpush.bf16.msra.mxu0 0
        %2108 = vmatpush.bf16.msra.mxu0 0
        %2109 = vmatpush.bf16.msra.mxu0 0
        %2110 = vmatpush.bf16.msra.mxu0 %v2098
        %2111 = vmatpush.bf16.msra.mxu0 %v2097
        %2112 = vmatpush.bf16.msra.mxu0 %v2096
        %2113 = vmatpush.bf16.msra.mxu0 %v2095
        %2114 = vmatpush.bf16.msra.mxu0 %v2094
        %2115 = vmatmul.bf16.gmra.mxu0 %v2105
        %v2116 = vpop.f32.mrf.mxu0
        %v2117 = vadd.f32 0.0, %v2116
        %v2118 = vpop.f32.mrf.mxu0
        %2119 = vdwg.mxu0
        %v2120 = vadd.f32 %v2060, %v2117
        %v2121 = vld [vmem:[%s6] sm:$0x1]
        %v2122 = vadd.f32 %v2120, %v2121
        %v2123 = vmax.f32 %v2122, 0.0
        %v2124 = vpack.c.bf16 %v2123, %v2123
        %v2125 = vld [vmem:[%s7] sm:$0xf]
        %v2126 = vld [vmem:[%s7 + $0x4] sm:$0xf]
        %v2127 = vld [vmem:[%s7 + $0x8] sm:$0xf]
        %v2128 = vld [vmem:[%s7 + $0xc] sm:$0xf]
        %v2129 = vld [vmem:[%s7 + $0x10] sm:$0xf]
        %v2130 = vld [vmem:[%s7 + $0x14] sm:$0xf]
        %v2131 = vld [vmem:[%s7 + $0x18] sm:$0xf]
        %v2132 = vld [vmem:[%s7 + $0x1c] sm:$0xf]
        %v2133 = vld [vmem:[%s7 + $0x20] sm:$0xf]
        %v2134 = vld [vmem:[%s7 + $0x24] sm:$0xf]
        %v2135 = vld [vmem:[%s7 + $0x28] sm:$0xf]
        %v2136 = vld [vmem:[%s7 + $0x2c] sm:$0xf]
        %v2137 = vld [vmem:[%s7 + $0x30] sm:$0xf]
        %v2138 = vld [vmem:[%s7 + $0x34] sm:$0xf]
        %v2139 = vld [vmem:[%s7 + $0x38] sm:$0xf]
        %v2140 = vld [vmem:[%s8] sm:$0x1]
        %v2156 = vunpack.c.l.b16 %v2125
        %v2157 = vunpack.c.l.b16 %v2126
        %v2158 = vunpack.c.l.b16 %v2127
        %v2159 = vunpack.c.l.b16 %v2128
        %v2160 = vunpack.c.l.b16 %v2129
        %v2161 = vunpack.c.l.b16 %v2130
        %v2162 = vunpack.c.l.b16 %v2131
        %v2163 = vunpack.c.l.b16 %v2132
        %v2164 = vunpack.c.l.b16 %v2133
        %v2165 = vunpack.c.l.b16 %v2134
        %v2166 = vunpack.c.l.b16 %v2135
        %v2167 = vunpack.c.l.b16 %v2136
        %v2168 = vunpack.c.l.b16 %v2137
        %v2169 = vunpack.c.l.b16 %v2138
        %v2170 = vunpack.c.l.b16 %v2139
        %v2171 = vpack.c.b16 %v2157, %v2156
        %v2172 = vpack.c.b16 %v2159, %v2158
        %v2173 = vpack.c.b16 %v2161, %v2160
        %v2174 = vpack.c.b16 %v2163, %v2162
        %v2175 = vpack.c.b16 %v2165, %v2164
        %v2176 = vpack.c.b16 %v2167, %v2166
        %v2177 = vpack.c.b16 %v2169, %v2168
        %v2178 = vpack.c.b16 %v2170, %v2170
        %vm2186 = vcmask 982016
        %v2188 = vsel %vm2186, %v2124, 0
        %vm2190 = vcmask 1043456
        %v2192 = vsel %vm2190, %v2178, 0
        %2194 = vmatpush.bf16.msra.mxu0 %v2192
        %2195 = vmatpush.bf16.msra.mxu0 %v2177
        %2196 = vmatpush.bf16.msra.mxu0 %v2176
        %2197 = vmatpush.bf16.msra.mxu0 %v2175
        %2198 = vmatpush.bf16.msra.mxu0 %v2174
        %2199 = vmatpush.bf16.msra.mxu0 %v2173
        %2200 = vmatpush.bf16.msra.mxu0 %v2172
        %2201 = vmatpush.bf16.msra.mxu0 %v2171
        %2202 = vmatmul.bf16.gmra.mxu0 %v2188
        %v2203 = vpop.f32.mrf.mxu0
        %v2204 = vadd.f32 %v2140, %v2203
        %v2205 = vpop.f32.mrf.mxu0
        %2206 = vdwg.mxu0
        %v2207 = vmax.f32 %v2204, 0.0
        %v2208 = vpack.c.bf16 %v2207, %v2207
        %v2209 = vld [vmem:[%s9] sm:$0xf]
        %v2210 = vld [vmem:[%s9 + $0x4] sm:$0xf]
        %v2211 = vld [vmem:[%s9 + $0x8] sm:$0xf]
        %v2212 = vld [vmem:[%s9 + $0xc] sm:$0xf]
        %v2213 = vld [vmem:[%s9 + $0x10] sm:$0xf]
        %v2214 = vld [vmem:[%s9 + $0x14] sm:$0xf]
        %v2215 = vld [vmem:[%s9 + $0x18] sm:$0xf]
        %v2216 = vld [vmem:[%s9 + $0x1c] sm:$0xf]
        %v2217 = vld [vmem:[%s9 + $0x20] sm:$0xf]
        %v2218 = vld [vmem:[%s9 + $0x24] sm:$0xf]
        %v2219 = vld [vmem:[%s9 + $0x28] sm:$0x3]
        %v2220 = vld [vmem:[%s10] sm:$0x1]
        %v2232 = vunpack.c.l.b16 %v2209
        %v2233 = vunpack.c.l.b16 %v2210
        %v2234 = vunpack.c.l.b16 %v2211
        %v2235 = vunpack.c.l.b16 %v2212
        %v2236 = vunpack.c.l.b16 %v2213
        %v2237 = vunpack.c.l.b16 %v2214
        %v2238 = vunpack.c.l.b16 %v2215
        %v2239 = vunpack.c.l.b16 %v2216
        %v2240 = vunpack.c.l.b16 %v2217
        %v2241 = vunpack.c.l.b16 %v2218
        %v2242 = vunpack.c.l.b16 %v2219
        %v2243 = vpack.c.b16 %v2233, %v2232
        %v2244 = vpack.c.b16 %v2235, %v2234
        %v2245 = vpack.c.b16 %v2237, %v2236
        %v2246 = vpack.c.b16 %v2239, %v2238
        %v2247 = vpack.c.b16 %v2241, %v2240
        %v2248 = vpack.c.b16 %v2242, %v2242
        %v2255 = vsel %vm1217, %v2208, 0
        %v2258 = vsel %vm1221, %v2248, 0
        %2260 = vmatpush.bf16.msra.mxu0 0
        %2261 = vmatpush.bf16.msra.mxu0 0
        %2262 = vmatpush.bf16.msra.mxu0 %v2258
        %2263 = vmatpush.bf16.msra.mxu0 %v2247
        %2264 = vmatpush.bf16.msra.mxu0 %v2246
        %2265 = vmatpush.bf16.msra.mxu0 %v2245
        %2266 = vmatpush.bf16.msra.mxu0 %v2244
        %2267 = vmatpush.bf16.msra.mxu0 %v2243
        %2268 = vmatmul.bf16.gmra.mxu0 %v2255
        %v2269 = vpop.f32.mrf.mxu0
        %v2270 = vadd.f32 %v2220, %v2269
        %v2271 = vpop.f32.mrf.mxu0
        %2272 = vdwg.mxu0
        %vm2273 = vcmask 73728
        %2274 = vst.msk [vmem:[%s378] sm:$0x1] %vm2273, %v2270
        %s2275 = sand.u32 %s269, 1
        %s2276 = scalar_lea.sflag [#allocation6], %s2275
        %s2277 = sand.u32 %s269, 1
        %s2278 = scalar_lea.vmem [#allocation5], %s2277
        // Predicated region
        $region65: #{lenet_forward.1} parent=63 // pred_check
          %p2279 = pneg %p279
        $region66: #{lenet_forward.1} parent=63 // pred_check_branch
          %2281 = sbr.rel (%p2279) target = $region68
        $region67: #{lenet_forward.1} parent=63 // pred_region
          %2283 = vsyncadd %s2276, 0
          %s2284 = scalar_lea.hbm %s11, %s25
          %s2286 = sshll.u32 %s2278, 4
          %s2287 = int_to_ptr.vmem [resolvable:$true] %s2286
          %s2288 = sshll.u32 %s2284, 4
          %s2289 = int_to_ptr.hbm [resolvable:$true] %s2288
          %2291 = dma.vmem_to_hbm [thread:$0]  %s2287, 16, %s2289, %s2276
        $region68: #{lenet_forward.1} parent=63 // pred_fallthru
          _
      $region64: #{lenet_forward.1} parent=5 // pred_fallthru
        _
      %p2292 = scmp.le.s32.totalorder 2, %s20
      // Predicated region
      $region69: #{lenet_forward.1} parent=5 // pred_check
        %p2293 = pneg %p2292
      $region70: #{lenet_forward.1} parent=5 // pred_check_branch
        %2295 = sbr.rel (%p2293) target = $region72
      $region71: #{lenet_forward.1} parent=5 // pred_region
        %s2296 = ssub.s32 %s20, 2
        // Predicated region
        $region73: #{lenet_forward.1} parent=71 // pred_check
          %p2297 = pneg %p285
        $region74: #{lenet_forward.1} parent=71 // pred_check_branch
          %2299 = sbr.rel (%p2297) target = $region76
        $region75: #{lenet_forward.1} parent=71 // pred_region
          %s2300 = sand.u32 %s270, 1
          %s2301 = scalar_lea.sflag [#allocation6], %s2300
          %s2302 = sand.u32 %s270, 1
          %s2303 = scalar_lea.vmem [#allocation5], %s2302
          %2305 = dma.done %s2301, 16
        $region76: #{lenet_forward.1} parent=71 // pred_fallthru
          _
      $region72: #{lenet_forward.1} parent=5 // pred_fallthru
        _
    $region6: #{lenet_forward.1} parent=1 // loop_footer
      %s24 = sadd.s32 1, %s20
    $region7: #{lenet_forward.1} parent=1 // loop_footer_branch
      %19 = sbr.rel target = $region3
    $region8: #{lenet_forward.1} parent=1 // loop_exit
      _
    %2306 = vsyncpa [#allocation6], 1
    %s2307 = scalar_lea.sflag [#allocation6], 1
    %2308 = vsyncpa %s2307, 1

</llo_original>
